<compile_context>
chip_gen: v5e
topology: v5e:2x2
jax: 0.10.0
libtpu: 0.0.40
codegen_flags: <defaults>
</compile_context>

<pallas_src>
import functools

import numpy as np
import jax
import jax.numpy as jnp
from jax.experimental import pallas as pl
from jax.experimental.pallas import tpu as pltpu

VOCAB = 50
VOCAB_PAD = 128      # lane-padded vocab for the one-hot embedding matmul
TAGSET = 7
EMB = 64
HIDDEN = 64          # module's hidden_dim (total bidirectional size)
H = HIDDEN // 2      # per-direction hidden size = 32
NUM_LAYERS = 4
K_PAD = 128          # lane-dense padded FC output width


# ---------------------------------------------------------------------------
# Fused kernel: one-hot embedding + 4 bidirectional RNN layers + FC head.
#   tok_ref  : [T*Bp, 1]        int32  time-major flattened token ids
#   cmask_ref: [T*Bp, 2H]       f32    row block i = [mask(t=i) | mask(t=T-1-i)]
#   embt_ref : [VOCAB_PAD, EMB] f32    embedding table (rows >= VOCAB are zero)
#   wih_ref  : [L, 64, 2H]      f32    [Wih_f^T | Wih_b^T] per layer
#   wblk_ref : [L, 2H, 2H]      f32    blockdiag(Whh_f^T, Whh_b^T) per layer
#   b_ref    : [L, 1, 2H]       f32    [(bih+bhh)_f | (bih+bhh)_b] per layer
#   fcw_ref  : [2H, K_PAD]      f32    fc.weight^T padded to 128 lanes
#   fcb_ref  : [1, K_PAD]       f32    fc.bias padded to 128 lanes
#   out_ref  : [T*Bp, K_PAD]    f32    logits (lane-dense)
#   buf_a/b  : [T*Bp, 2H]       f32    ping-pong layer-output scratch
# ---------------------------------------------------------------------------
def _bilstm_stack_kernel(tok_ref, cmask_ref, embt_ref, wih_ref, wblk_ref,
                         b_ref, fcw_ref, fcb_ref, out_ref, buf_a, buf_b,
                         *, T, Bp):
    TB = T * Bp

    # ---- embedding lookup as a one-hot MXU matmul ---------------------------
    vocab_iota = jax.lax.broadcasted_iota(jnp.int32, (TB, VOCAB_PAD), 1)
    onehot = (vocab_iota == tok_ref[...]).astype(jnp.float32)        # [TB, 128]
    x = jnp.dot(onehot, embt_ref[...],
                preferred_element_type=jnp.float32)                  # [TB, EMB]

    # constant lane-select mask: left H lanes = forward half
    lane_iota = jax.lax.broadcasted_iota(jnp.int32, (Bp, 2 * H), 1)
    left_half = lane_iota < H

    bufs = (buf_a, buf_b)
    src_val = x                                    # layer 0 input (value)
    for l in range(NUM_LAYERS):
        dst = bufs[l % 2]

        # ---- hoisted input projection for BOTH directions (one matmul) ------
        pre = (jnp.dot(src_val, wih_ref[l], preferred_element_type=jnp.float32)
               + b_ref[l])                                           # [TB, 2H]
        wblk = wblk_ref[l]                                           # [2H, 2H]

        # ---- fused fwd/bwd recurrence, fully unrolled over time -------------
        # state s = [h_f(time i) | h_b(time T-1-i)] in one [Bp, 2H] tile
        s = jnp.zeros((Bp, 2 * H), jnp.float32)
        for i in range(T):
            rf = i * Bp                  # forward processes time i
            rb = (T - 1 - i) * Bp        # backward processes time T-1-i
            pre_i = jnp.where(left_half, pre[rf:rf + Bp, :], pre[rb:rb + Bp, :])
            s = jnp.tanh(pre_i + jnp.dot(s, wblk,
                                         preferred_element_type=jnp.float32))
            # packed-sequence semantics: zero carry/output outside valid region
            s = s * cmask_ref[pl.ds(rf, Bp), :]
            dst[pl.ds(rf, Bp), :H] = s[:, :H]
            dst[pl.ds(rb, Bp), H:] = s[:, H:]

        src_val = dst[...]

    # ---- lane-dense FC head: logits = [hf | hb] @ fc_w^T + fc_b -------------
    out_ref[...] = (jnp.dot(src_val, fcw_ref[...],
                            preferred_element_type=jnp.float32)
                    + fcb_ref[...])


# ---------------------------------------------------------------------------
# Parameter packing (done once): transpose / concat / pad weights for the kernel.
# ---------------------------------------------------------------------------
def pack_params(params):
    wih_l, wblk_l, b_l = [], [], []
    for l in range(NUM_LAYERS):
        wih_f, whh_f, bih_f, bhh_f = params["rnn"][l][0]
        wih_b, whh_b, bih_b, bhh_b = params["rnn"][l][1]
        wih_l.append(jnp.concatenate([wih_f.T, wih_b.T], axis=1))    # [64, 2H]
        wblk = jnp.zeros((2 * H, 2 * H), jnp.float32)
        wblk = wblk.at[:H, :H].set(whh_f.T).at[H:, H:].set(whh_b.T)  # blockdiag
        wblk_l.append(wblk)
        b_l.append(jnp.concatenate([bih_f + bhh_f, bih_b + bhh_b]).reshape(1, 2 * H))

    embt = jnp.zeros((VOCAB_PAD, EMB), jnp.float32).at[:VOCAB].set(params["embedding"])
    fcw_pad = jnp.zeros((2 * H, K_PAD), jnp.float32).at[:, :TAGSET].set(params["fc_w"].T)
    fcb_pad = jnp.zeros((1, K_PAD), jnp.float32).at[0, :TAGSET].set(params["fc_b"])
    return {
        "embt": embt,                        # [128, 64]
        "wih": jnp.stack(wih_l),             # [L, 64, 2H]
        "wblk": jnp.stack(wblk_l),           # [L, 2H, 2H]
        "bias": jnp.stack(b_l),              # [L, 1, 2H]
        "fcw": fcw_pad,                      # [2H, 128]
        "fcb": fcb_pad,                      # [1, 128]
    }


# ---------------------------------------------------------------------------
# Full forward pass: token/ mask prep + one fused Pallas kernel + final slice.
# ---------------------------------------------------------------------------
def bilstm_ner_forward(packed, tokens, lengths, max_len=None):
    B, T = tokens.shape
    Bp = max(8, ((B + 7) // 8) * 8)             # pad batch to sublane count
    TB = T * Bp

    tok_p = jnp.zeros((Bp, T), jnp.int32).at[:B].set(tokens.astype(jnp.int32))
    tok_flat = jnp.transpose(tok_p, (1, 0)).reshape(TB, 1)          # time-major

    len_p = jnp.zeros((Bp,), jnp.int32).at[:B].set(jnp.asarray(lengths, jnp.int32))
    mask_tb = (jnp.arange(T, dtype=jnp.int32)[:, None] < len_p[None, :]
               ).astype(jnp.float32)                                 # [T, Bp]
    # row block i: left H lanes = mask(time i), right H lanes = mask(time T-1-i)
    cmask = jnp.concatenate(
        [jnp.broadcast_to(mask_tb[:, :, None], (T, Bp, H)),
         jnp.broadcast_to(mask_tb[::-1, :, None], (T, Bp, H))],
        axis=2).reshape(TB, 2 * H)

    # TODO(synk): at production B/T, add a batch grid with
    # dimension_semantics=("parallel",) and pass lengths via
    # PrefetchScalarGridSpec scalar prefetch instead of a VMEM mask.
    out = pl.pallas_call(
        functools.partial(_bilstm_stack_kernel, T=T, Bp=Bp),
        out_shape=jax.ShapeDtypeStruct((TB, K_PAD), jnp.float32),
        in_specs=[pl.BlockSpec(memory_space=pltpu.MemorySpace.VMEM)] * 8,
        out_specs=pl.BlockSpec(memory_space=pltpu.MemorySpace.VMEM),
        scratch_shapes=[pltpu.VMEM((TB, 2 * H), jnp.float32)] * 2,
    )(tok_flat, cmask, packed["embt"], packed["wih"], packed["wblk"],
      packed["bias"], packed["fcw"], packed["fcb"])

    logits = out.reshape(T, Bp, K_PAD).transpose(1, 0, 2)[:B, :, :TAGSET]
    if max_len is not None:                     # pad_packed_sequence length
        logits = logits[:, :max_len, :]
    return logits


# ---------------------------------------------------------------------------
# Parameters (deterministic, shapes exactly as the PyTorch module implies).
# ---------------------------------------------------------------------------
def init_params(key):
    params = {}
    key, k = jax.random.split(key)
    emb = jax.random.normal(k, (VOCAB, EMB), jnp.float32) * 0.1
    emb = emb.at[0].set(0.0)     # padding_idx = word2idx['<PAD>'] == 0
    params["embedding"] = emb

    scale = 1.0 / np.sqrt(H)
    layers = []
    for l in range(NUM_LAYERS):
        in_dim = EMB if l == 0 else 2 * H          # 64 for every layer here
        dirs = []
        for _ in range(2):                         # forward, backward
            key, k1, k2, k3, k4 = jax.random.split(key, 5)
            wih = jax.random.uniform(k1, (H, in_dim), jnp.float32, -scale, scale)
            whh = jax.random.uniform(k2, (H, H), jnp.float32, -scale, scale)
            bih = jax.random.uniform(k3, (H,), jnp.float32, -scale, scale)
            bhh = jax.random.uniform(k4, (H,), jnp.float32, -scale, scale)
            dirs.append((wih, whh, bih, bhh))
        layers.append(dirs)
    params["rnn"] = layers

    key, k1, k2 = jax.random.split(key, 3)
    fscale = 1.0 / np.sqrt(HIDDEN)
    params["fc_w"] = jax.random.uniform(k1, (TAGSET, HIDDEN), jnp.float32, -fscale, fscale)
    params["fc_b"] = jax.random.uniform(k2, (TAGSET,), jnp.float32, -fscale, fscale)
    return params


# ---------------------------------------------------------------------------
# Pure-numpy reference (packed-RNN semantics) for correctness check.
# ---------------------------------------------------------------------------
def ref_forward(params, tokens_np, lengths_np):
    x = np.asarray(params["embedding"])[tokens_np]
    B, T, _ = x.shape
    for l in range(NUM_LAYERS):
        outs = []
        for reverse in (False, True):
            wih, whh, bih, bhh = [np.asarray(a) for a in params["rnn"][l][1 if reverse else 0]]
            y = np.zeros((B, T, H), np.float32)
            for b in range(B):
                h = np.zeros(H, np.float32)
                t_range = range(T - 1, -1, -1) if reverse else range(T)
                for t in t_range:
                    if t < lengths_np[b]:
                        h = np.tanh(x[b, t] @ wih.T + h @ whh.T + bih + bhh)
                        y[b, t] = h
                    else:
                        h = np.zeros(H, np.float32)
            outs.append(y)
        x = np.concatenate(outs, axis=-1)
    logits = x @ np.asarray(params["fc_w"]).T + np.asarray(params["fc_b"])
    return logits[:, : int(np.max(lengths_np)), :]


if __name__ == "__main__":
    key = jax.random.PRNGKey(0)
    pkey, dkey = jax.random.split(key)
    params = init_params(pkey)
    packed = pack_params(params)

    B, T = 2, 8
    lengths_np = np.array([8, 5], dtype=np.int64)
    tokens = np.array(jax.random.randint(dkey, (B, T), 1, VOCAB, jnp.int32))
    for b in range(B):
        tokens[b, lengths_np[b]:] = 0          # '<PAD>' token id
    tokens = jnp.asarray(tokens, jnp.int32)

    fwd = jax.jit(bilstm_ner_forward, static_argnames=("max_len",))
    logits = fwd(packed, tokens, jnp.asarray(lengths_np, jnp.int32),
                 max_len=int(np.max(lengths_np)))
    logits = jax.block_until_ready(logits)

    ref = ref_forward(params, np.asarray(tokens), lengths_np)
    np.testing.assert_allclose(np.asarray(logits), ref, rtol=2e-4, atol=2e-4)
    print("KERNEL_OK")
</pallas_src>

<mosaic_0001>
module attributes {stable_mosaic.version = 11 : i64} {
  func.func @_bilstm_stack_kernel(%arg0: memref<64x1xi32, #tpu.memory_space<vmem>>, %arg1: memref<64x64xf32, #tpu.memory_space<vmem>>, %arg2: memref<128x64xf32, #tpu.memory_space<vmem>>, %arg3: memref<4x64x64xf32, #tpu.memory_space<vmem>>, %arg4: memref<4x64x64xf32, #tpu.memory_space<vmem>>, %arg5: memref<4x1x64xf32, #tpu.memory_space<vmem>>, %arg6: memref<64x128xf32, #tpu.memory_space<vmem>>, %arg7: memref<1x128xf32, #tpu.memory_space<vmem>>, %arg8: memref<64x128xf32, #tpu.memory_space<vmem>>, %arg9: memref<64x64xf32, #tpu.memory_space<vmem>>, %arg10: memref<64x64xf32, #tpu.memory_space<vmem>>) attributes {dimension_semantics = [], scalar_prefetch = 0 : i64, scratch_operands = 2 : i64, tpu.core_type = #tpu.core_type<tc>} {
    %0 = tpu.iota {dimensions = array<i32: 1>} : vector<64x128xi32>
    %c0 = arith.constant 0 : index
    %c0_0 = arith.constant 0 : index
    %1 = vector.load %arg0[%c0, %c0_0] : memref<64x1xi32, #tpu.memory_space<vmem>>, vector<64x1xi32>
    %2 = vector.broadcast %1 : vector<64x1xi32> to vector<64x128xi32>
    %3 = arith.cmpi eq, %0, %2 : vector<64x128xi32>
    %4 = arith.extui %3 : vector<64x128xi1> to vector<64x128xi32>
    %5 = arith.sitofp %4 : vector<64x128xi32> to vector<64x128xf32>
    %c0_1 = arith.constant 0 : index
    %c0_2 = arith.constant 0 : index
    %6 = vector.load %arg2[%c0_1, %c0_2] : memref<128x64xf32, #tpu.memory_space<vmem>>, vector<128x64xf32>
    %cst = arith.constant dense<0.000000e+00> : vector<64x64xf32>
    %7 = tpu.matmul %5, %6, %cst {dimension_numbers = #tpu.dot_dimension_numbers<[1], [0], [0], [1], [0, 0, 1, 1], [], []>} : vector<64x128xf32>, vector<128x64xf32>, vector<64x64xf32> -> vector<64x64xf32>
    %8 = tpu.iota {dimensions = array<i32: 1>} : vector<8x64xi32>
    %c32_i32 = arith.constant 32 : i32
    %9 = vector.broadcast %c32_i32 : i32 to vector<8x64xi32>
    %10 = arith.cmpi slt, %8, %9 : vector<8x64xi32>
    %c0_3 = arith.constant 0 : index
    %c0_4 = arith.constant 0 : index
    %c0_5 = arith.constant 0 : index
    %11 = vector.load %arg3[%c0_3, %c0_4, %c0_5] : memref<4x64x64xf32, #tpu.memory_space<vmem>>, vector<1x64x64xf32>
    %12 = vector.shape_cast %11 : vector<1x64x64xf32> to vector<64x64xf32>
    %cst_6 = arith.constant dense<0.000000e+00> : vector<64x64xf32>
    %13 = tpu.matmul %7, %12, %cst_6 {dimension_numbers = #tpu.dot_dimension_numbers<[1], [0], [0], [1], [0, 0, 1, 1], [], []>} : vector<64x64xf32>, vector<64x64xf32>, vector<64x64xf32> -> vector<64x64xf32>
    %c0_7 = arith.constant 0 : index
    %c0_8 = arith.constant 0 : index
    %c0_9 = arith.constant 0 : index
    %14 = vector.load %arg5[%c0_7, %c0_8, %c0_9] : memref<4x1x64xf32, #tpu.memory_space<vmem>>, vector<1x1x64xf32>
    %15 = vector.shape_cast %14 : vector<1x1x64xf32> to vector<1x64xf32>
    %16 = vector.broadcast %15 : vector<1x64xf32> to vector<64x64xf32>
    %17 = arith.addf %13, %16 : vector<64x64xf32>
    %c0_10 = arith.constant 0 : index
    %c0_11 = arith.constant 0 : index
    %c0_12 = arith.constant 0 : index
    %18 = vector.load %arg4[%c0_10, %c0_11, %c0_12] : memref<4x64x64xf32, #tpu.memory_space<vmem>>, vector<1x64x64xf32>
    %19 = vector.shape_cast %18 : vector<1x64x64xf32> to vector<64x64xf32>
    %cst_13 = arith.constant 0.000000e+00 : f32
    %20 = vector.broadcast %cst_13 : f32 to vector<8x64xf32>
    %21 = vector.extract_strided_slice %17 {offsets = [0, 0], sizes = [8, 64], strides = [1, 1]} : vector<64x64xf32> to vector<8x64xf32>
    %22 = vector.extract_strided_slice %17 {offsets = [56, 0], sizes = [8, 64], strides = [1, 1]} : vector<64x64xf32> to vector<8x64xf32>
    %23 = arith.select %10, %21, %22 : vector<8x64xi1>, vector<8x64xf32>
    %cst_14 = arith.constant dense<0.000000e+00> : vector<8x64xf32>
    %24 = tpu.matmul %20, %19, %cst_14 {dimension_numbers = #tpu.dot_dimension_numbers<[1], [0], [0], [1], [0, 0, 1, 1], [], []>} : vector<8x64xf32>, vector<64x64xf32>, vector<8x64xf32> -> vector<8x64xf32>
    %25 = arith.addf %23, %24 : vector<8x64xf32>
    %26 = math.tanh %25 : vector<8x64xf32>
    %c0_15 = arith.constant 0 : index
    %c0_16 = arith.constant 0 : index
    %27 = vector.load %arg1[%c0_15, %c0_16] : memref<64x64xf32, #tpu.memory_space<vmem>>, vector<8x64xf32>
    %28 = arith.mulf %26, %27 : vector<8x64xf32>
    %29 = vector.extract_strided_slice %28 {offsets = [0, 0], sizes = [8, 32], strides = [1, 1]} : vector<8x64xf32> to vector<8x32xf32>
    %c0_17 = arith.constant 0 : index
    %c0_18 = arith.constant 0 : index
    %30 = vector.load %arg9[%c0_17, %c0_18] : memref<64x64xf32, #tpu.memory_space<vmem>>, vector<8x32xf32>
    tpu.vector_store %arg9[%c0_17, %c0_18], %29 {strides = array<i32>} : memref<64x64xf32, #tpu.memory_space<vmem>>, vector<8x32xf32>,
    %31 = vector.extract_strided_slice %28 {offsets = [0, 32], sizes = [8, 32], strides = [1, 1]} : vector<8x64xf32> to vector<8x32xf32>
    %c56 = arith.constant 56 : index
    %c32 = arith.constant 32 : index
    %32 = vector.load %arg9[%c56, %c32] : memref<64x64xf32, #tpu.memory_space<vmem>>, vector<8x32xf32>
    tpu.vector_store %arg9[%c56, %c32], %31 {strides = array<i32>} : memref<64x64xf32, #tpu.memory_space<vmem>>, vector<8x32xf32>,
    %33 = vector.extract_strided_slice %17 {offsets = [8, 0], sizes = [8, 64], strides = [1, 1]} : vector<64x64xf32> to vector<8x64xf32>
    %34 = vector.extract_strided_slice %17 {offsets = [48, 0], sizes = [8, 64], strides = [1, 1]} : vector<64x64xf32> to vector<8x64xf32>
    %35 = arith.select %10, %33, %34 : vector<8x64xi1>, vector<8x64xf32>
    %cst_19 = arith.constant dense<0.000000e+00> : vector<8x64xf32>
    %36 = tpu.matmul %28, %19, %cst_19 {dimension_numbers = #tpu.dot_dimension_numbers<[1], [0], [0], [1], [0, 0, 1, 1], [], []>} : vector<8x64xf32>, vector<64x64xf32>, vector<8x64xf32> -> vector<8x64xf32>
    %37 = arith.addf %35, %36 : vector<8x64xf32>
    %38 = math.tanh %37 : vector<8x64xf32>
    %c8 = arith.constant 8 : index
    %c0_20 = arith.constant 0 : index
    %39 = vector.load %arg1[%c8, %c0_20] : memref<64x64xf32, #tpu.memory_space<vmem>>, vector<8x64xf32>
    %40 = arith.mulf %38, %39 : vector<8x64xf32>
    %41 = vector.extract_strided_slice %40 {offsets = [0, 0], sizes = [8, 32], strides = [1, 1]} : vector<8x64xf32> to vector<8x32xf32>
    %c8_21 = arith.constant 8 : index
    %c0_22 = arith.constant 0 : index
    %42 = vector.load %arg9[%c8_21, %c0_22] : memref<64x64xf32, #tpu.memory_space<vmem>>, vector<8x32xf32>
    tpu.vector_store %arg9[%c8_21, %c0_22], %41 {strides = array<i32>} : memref<64x64xf32, #tpu.memory_space<vmem>>, vector<8x32xf32>,
    %43 = vector.extract_strided_slice %40 {offsets = [0, 32], sizes = [8, 32], strides = [1, 1]} : vector<8x64xf32> to vector<8x32xf32>
    %c48 = arith.constant 48 : index
    %c32_23 = arith.constant 32 : index
    %44 = vector.load %arg9[%c48, %c32_23] : memref<64x64xf32, #tpu.memory_space<vmem>>, vector<8x32xf32>
    tpu.vector_store %arg9[%c48, %c32_23], %43 {strides = array<i32>} : memref<64x64xf32, #tpu.memory_space<vmem>>, vector<8x32xf32>,
    %45 = vector.extract_strided_slice %17 {offsets = [16, 0], sizes = [8, 64], strides = [1, 1]} : vector<64x64xf32> to vector<8x64xf32>
    %46 = vector.extract_strided_slice %17 {offsets = [40, 0], sizes = [8, 64], strides = [1, 1]} : vector<64x64xf32> to vector<8x64xf32>
    %47 = arith.select %10, %45, %46 : vector<8x64xi1>, vector<8x64xf32>
    %cst_24 = arith.constant dense<0.000000e+00> : vector<8x64xf32>
    %48 = tpu.matmul %40, %19, %cst_24 {dimension_numbers = #tpu.dot_dimension_numbers<[1], [0], [0], [1], [0, 0, 1, 1], [], []>} : vector<8x64xf32>, vector<64x64xf32>, vector<8x64xf32> -> vector<8x64xf32>
    %49 = arith.addf %47, %48 : vector<8x64xf32>
    %50 = math.tanh %49 : vector<8x64xf32>
    %c16 = arith.constant 16 : index
    %c0_25 = arith.constant 0 : index
    %51 = vector.load %arg1[%c16, %c0_25] : memref<64x64xf32, #tpu.memory_space<vmem>>, vector<8x64xf32>
    %52 = arith.mulf %50, %51 : vector<8x64xf32>
    %53 = vector.extract_strided_slice %52 {offsets = [0, 0], sizes = [8, 32], strides = [1, 1]} : vector<8x64xf32> to vector<8x32xf32>
    %c16_26 = arith.constant 16 : index
    %c0_27 = arith.constant 0 : index
    %54 = vector.load %arg9[%c16_26, %c0_27] : memref<64x64xf32, #tpu.memory_space<vmem>>, vector<8x32xf32>
    tpu.vector_store %arg9[%c16_26, %c0_27], %53 {strides = array<i32>} : memref<64x64xf32, #tpu.memory_space<vmem>>, vector<8x32xf32>,
    %55 = vector.extract_strided_slice %52 {offsets = [0, 32], sizes = [8, 32], strides = [1, 1]} : vector<8x64xf32> to vector<8x32xf32>
    %c40 = arith.constant 40 : index
    %c32_28 = arith.constant 32 : index
    %56 = vector.load %arg9[%c40, %c32_28] : memref<64x64xf32, #tpu.memory_space<vmem>>, vector<8x32xf32>
    tpu.vector_store %arg9[%c40, %c32_28], %55 {strides = array<i32>} : memref<64x64xf32, #tpu.memory_space<vmem>>, vector<8x32xf32>,
    %57 = vector.extract_strided_slice %17 {offsets = [24, 0], sizes = [8, 64], strides = [1, 1]} : vector<64x64xf32> to vector<8x64xf32>
    %58 = vector.extract_strided_slice %17 {offsets = [32, 0], sizes = [8, 64], strides = [1, 1]} : vector<64x64xf32> to vector<8x64xf32>
    %59 = arith.select %10, %57, %58 : vector<8x64xi1>, vector<8x64xf32>
    %cst_29 = arith.constant dense<0.000000e+00> : vector<8x64xf32>
    %60 = tpu.matmul %52, %19, %cst_29 {dimension_numbers = #tpu.dot_dimension_numbers<[1], [0], [0], [1], [0, 0, 1, 1], [], []>} : vector<8x64xf32>, vector<64x64xf32>, vector<8x64xf32> -> vector<8x64xf32>
    %61 = arith.addf %59, %60 : vector<8x64xf32>
    %62 = math.tanh %61 : vector<8x64xf32>
    %c24 = arith.constant 24 : index
    %c0_30 = arith.constant 0 : index
    %63 = vector.load %arg1[%c24, %c0_30] : memref<64x64xf32, #tpu.memory_space<vmem>>, vector<8x64xf32>
    %64 = arith.mulf %62, %63 : vector<8x64xf32>
    %65 = vector.extract_strided_slice %64 {offsets = [0, 0], sizes = [8, 32], strides = [1, 1]} : vector<8x64xf32> to vector<8x32xf32>
    %c24_31 = arith.constant 24 : index
    %c0_32 = arith.constant 0 : index
    %66 = vector.load %arg9[%c24_31, %c0_32] : memref<64x64xf32, #tpu.memory_space<vmem>>, vector<8x32xf32>
    tpu.vector_store %arg9[%c24_31, %c0_32], %65 {strides = array<i32>} : memref<64x64xf32, #tpu.memory_space<vmem>>, vector<8x32xf32>,
    %67 = vector.extract_strided_slice %64 {offsets = [0, 32], sizes = [8, 32], strides = [1, 1]} : vector<8x64xf32> to vector<8x32xf32>
    %c32_33 = arith.constant 32 : index
    %c32_34 = arith.constant 32 : index
    %68 = vector.load %arg9[%c32_33, %c32_34] : memref<64x64xf32, #tpu.memory_space<vmem>>, vector<8x32xf32>
    tpu.vector_store %arg9[%c32_33, %c32_34], %67 {strides = array<i32>} : memref<64x64xf32, #tpu.memory_space<vmem>>, vector<8x32xf32>,
    %69 = vector.extract_strided_slice %17 {offsets = [32, 0], sizes = [8, 64], strides = [1, 1]} : vector<64x64xf32> to vector<8x64xf32>
    %70 = vector.extract_strided_slice %17 {offsets = [24, 0], sizes = [8, 64], strides = [1, 1]} : vector<64x64xf32> to vector<8x64xf32>
    %71 = arith.select %10, %69, %70 : vector<8x64xi1>, vector<8x64xf32>
    %cst_35 = arith.constant dense<0.000000e+00> : vector<8x64xf32>
    %72 = tpu.matmul %64, %19, %cst_35 {dimension_numbers = #tpu.dot_dimension_numbers<[1], [0], [0], [1], [0, 0, 1, 1], [], []>} : vector<8x64xf32>, vector<64x64xf32>, vector<8x64xf32> -> vector<8x64xf32>
    %73 = arith.addf %71, %72 : vector<8x64xf32>
    %74 = math.tanh %73 : vector<8x64xf32>
    %c32_36 = arith.constant 32 : index
    %c0_37 = arith.constant 0 : index
    %75 = vector.load %arg1[%c32_36, %c0_37] : memref<64x64xf32, #tpu.memory_space<vmem>>, vector<8x64xf32>
    %76 = arith.mulf %74, %75 : vector<8x64xf32>
    %77 = vector.extract_strided_slice %76 {offsets = [0, 0], sizes = [8, 32], strides = [1, 1]} : vector<8x64xf32> to vector<8x32xf32>
    %c32_38 = arith.constant 32 : index
    %c0_39 = arith.constant 0 : index
    %78 = vector.load %arg9[%c32_38, %c0_39] : memref<64x64xf32, #tpu.memory_space<vmem>>, vector<8x32xf32>
    tpu.vector_store %arg9[%c32_38, %c0_39], %77 {strides = array<i32>} : memref<64x64xf32, #tpu.memory_space<vmem>>, vector<8x32xf32>,
    %79 = vector.extract_strided_slice %76 {offsets = [0, 32], sizes = [8, 32], strides = [1, 1]} : vector<8x64xf32> to vector<8x32xf32>
    %c24_40 = arith.constant 24 : index
    %c32_41 = arith.constant 32 : index
    %80 = vector.load %arg9[%c24_40, %c32_41] : memref<64x64xf32, #tpu.memory_space<vmem>>, vector<8x32xf32>
    tpu.vector_store %arg9[%c24_40, %c32_41], %79 {strides = array<i32>} : memref<64x64xf32, #tpu.memory_space<vmem>>, vector<8x32xf32>,
    %81 = vector.extract_strided_slice %17 {offsets = [40, 0], sizes = [8, 64], strides = [1, 1]} : vector<64x64xf32> to vector<8x64xf32>
    %82 = vector.extract_strided_slice %17 {offsets = [16, 0], sizes = [8, 64], strides = [1, 1]} : vector<64x64xf32> to vector<8x64xf32>
    %83 = arith.select %10, %81, %82 : vector<8x64xi1>, vector<8x64xf32>
    %cst_42 = arith.constant dense<0.000000e+00> : vector<8x64xf32>
    %84 = tpu.matmul %76, %19, %cst_42 {dimension_numbers = #tpu.dot_dimension_numbers<[1], [0], [0], [1], [0, 0, 1, 1], [], []>} : vector<8x64xf32>, vector<64x64xf32>, vector<8x64xf32> -> vector<8x64xf32>
    %85 = arith.addf %83, %84 : vector<8x64xf32>
    %86 = math.tanh %85 : vector<8x64xf32>
    %c40_43 = arith.constant 40 : index
    %c0_44 = arith.constant 0 : index
    %87 = vector.load %arg1[%c40_43, %c0_44] : memref<64x64xf32, #tpu.memory_space<vmem>>, vector<8x64xf32>
    %88 = arith.mulf %86, %87 : vector<8x64xf32>
    %89 = vector.extract_strided_slice %88 {offsets = [0, 0], sizes = [8, 32], strides = [1, 1]} : vector<8x64xf32> to vector<8x32xf32>
    %c40_45 = arith.constant 40 : index
    %c0_46 = arith.constant 0 : index
    %90 = vector.load %arg9[%c40_45, %c0_46] : memref<64x64xf32, #tpu.memory_space<vmem>>, vector<8x32xf32>
    tpu.vector_store %arg9[%c40_45, %c0_46], %89 {strides = array<i32>} : memref<64x64xf32, #tpu.memory_space<vmem>>, vector<8x32xf32>,
    %91 = vector.extract_strided_slice %88 {offsets = [0, 32], sizes = [8, 32], strides = [1, 1]} : vector<8x64xf32> to vector<8x32xf32>
    %c16_47 = arith.constant 16 : index
    %c32_48 = arith.constant 32 : index
    %92 = vector.load %arg9[%c16_47, %c32_48] : memref<64x64xf32, #tpu.memory_space<vmem>>, vector<8x32xf32>
    tpu.vector_store %arg9[%c16_47, %c32_48], %91 {strides = array<i32>} : memref<64x64xf32, #tpu.memory_space<vmem>>, vector<8x32xf32>,
    %93 = vector.extract_strided_slice %17 {offsets = [48, 0], sizes = [8, 64], strides = [1, 1]} : vector<64x64xf32> to vector<8x64xf32>
    %94 = vector.extract_strided_slice %17 {offsets = [8, 0], sizes = [8, 64], strides = [1, 1]} : vector<64x64xf32> to vector<8x64xf32>
    %95 = arith.select %10, %93, %94 : vector<8x64xi1>, vector<8x64xf32>
    %cst_49 = arith.constant dense<0.000000e+00> : vector<8x64xf32>
    %96 = tpu.matmul %88, %19, %cst_49 {dimension_numbers = #tpu.dot_dimension_numbers<[1], [0], [0], [1], [0, 0, 1, 1], [], []>} : vector<8x64xf32>, vector<64x64xf32>, vector<8x64xf32> -> vector<8x64xf32>
    %97 = arith.addf %95, %96 : vector<8x64xf32>
    %98 = math.tanh %97 : vector<8x64xf32>
    %c48_50 = arith.constant 48 : index
    %c0_51 = arith.constant 0 : index
    %99 = vector.load %arg1[%c48_50, %c0_51] : memref<64x64xf32, #tpu.memory_space<vmem>>, vector<8x64xf32>
    %100 = arith.mulf %98, %99 : vector<8x64xf32>
    %101 = vector.extract_strided_slice %100 {offsets = [0, 0], sizes = [8, 32], strides = [1, 1]} : vector<8x64xf32> to vector<8x32xf32>
    %c48_52 = arith.constant 48 : index
    %c0_53 = arith.constant 0 : index
    %102 = vector.load %arg9[%c48_52, %c0_53] : memref<64x64xf32, #tpu.memory_space<vmem>>, vector<8x32xf32>
    tpu.vector_store %arg9[%c48_52, %c0_53], %101 {strides = array<i32>} : memref<64x64xf32, #tpu.memory_space<vmem>>, vector<8x32xf32>,
    %103 = vector.extract_strided_slice %100 {offsets = [0, 32], sizes = [8, 32], strides = [1, 1]} : vector<8x64xf32> to vector<8x32xf32>
    %c8_54 = arith.constant 8 : index
    %c32_55 = arith.constant 32 : index
    %104 = vector.load %arg9[%c8_54, %c32_55] : memref<64x64xf32, #tpu.memory_space<vmem>>, vector<8x32xf32>
    tpu.vector_store %arg9[%c8_54, %c32_55], %103 {strides = array<i32>} : memref<64x64xf32, #tpu.memory_space<vmem>>, vector<8x32xf32>,
    %105 = vector.extract_strided_slice %17 {offsets = [56, 0], sizes = [8, 64], strides = [1, 1]} : vector<64x64xf32> to vector<8x64xf32>
    %106 = vector.extract_strided_slice %17 {offsets = [0, 0], sizes = [8, 64], strides = [1, 1]} : vector<64x64xf32> to vector<8x64xf32>
    %107 = arith.select %10, %105, %106 : vector<8x64xi1>, vector<8x64xf32>
    %cst_56 = arith.constant dense<0.000000e+00> : vector<8x64xf32>
    %108 = tpu.matmul %100, %19, %cst_56 {dimension_numbers = #tpu.dot_dimension_numbers<[1], [0], [0], [1], [0, 0, 1, 1], [], []>} : vector<8x64xf32>, vector<64x64xf32>, vector<8x64xf32> -> vector<8x64xf32>
    %109 = arith.addf %107, %108 : vector<8x64xf32>
    %110 = math.tanh %109 : vector<8x64xf32>
    %c56_57 = arith.constant 56 : index
    %c0_58 = arith.constant 0 : index
    %111 = vector.load %arg1[%c56_57, %c0_58] : memref<64x64xf32, #tpu.memory_space<vmem>>, vector<8x64xf32>
    %112 = arith.mulf %110, %111 : vector<8x64xf32>
    %113 = vector.extract_strided_slice %112 {offsets = [0, 0], sizes = [8, 32], strides = [1, 1]} : vector<8x64xf32> to vector<8x32xf32>
    %c56_59 = arith.constant 56 : index
    %c0_60 = arith.constant 0 : index
    %114 = vector.load %arg9[%c56_59, %c0_60] : memref<64x64xf32, #tpu.memory_space<vmem>>, vector<8x32xf32>
    tpu.vector_store %arg9[%c56_59, %c0_60], %113 {strides = array<i32>} : memref<64x64xf32, #tpu.memory_space<vmem>>, vector<8x32xf32>,
    %115 = vector.extract_strided_slice %112 {offsets = [0, 32], sizes = [8, 32], strides = [1, 1]} : vector<8x64xf32> to vector<8x32xf32>
    %c0_61 = arith.constant 0 : index
    %c32_62 = arith.constant 32 : index
    %116 = vector.load %arg9[%c0_61, %c32_62] : memref<64x64xf32, #tpu.memory_space<vmem>>, vector<8x32xf32>
    tpu.vector_store %arg9[%c0_61, %c32_62], %115 {strides = array<i32>} : memref<64x64xf32, #tpu.memory_space<vmem>>, vector<8x32xf32>,
    %c0_63 = arith.constant 0 : index
    %c0_64 = arith.constant 0 : index
    %117 = vector.load %arg9[%c0_63, %c0_64] : memref<64x64xf32, #tpu.memory_space<vmem>>, vector<64x64xf32>
    %c1 = arith.constant 1 : index
    %c0_65 = arith.constant 0 : index
    %c0_66 = arith.constant 0 : index
    %118 = vector.load %arg3[%c1, %c0_65, %c0_66] : memref<4x64x64xf32, #tpu.memory_space<vmem>>, vector<1x64x64xf32>
    %119 = vector.shape_cast %118 : vector<1x64x64xf32> to vector<64x64xf32>
    %cst_67 = arith.constant dense<0.000000e+00> : vector<64x64xf32>
    %120 = tpu.matmul %117, %119, %cst_67 {dimension_numbers = #tpu.dot_dimension_numbers<[1], [0], [0], [1], [0, 0, 1, 1], [], []>} : vector<64x64xf32>, vector<64x64xf32>, vector<64x64xf32> -> vector<64x64xf32>
    %c1_68 = arith.constant 1 : index
    %c0_69 = arith.constant 0 : index
    %c0_70 = arith.constant 0 : index
    %121 = vector.load %arg5[%c1_68, %c0_69, %c0_70] : memref<4x1x64xf32, #tpu.memory_space<vmem>>, vector<1x1x64xf32>
    %122 = vector.shape_cast %121 : vector<1x1x64xf32> to vector<1x64xf32>
    %123 = vector.broadcast %122 : vector<1x64xf32> to vector<64x64xf32>
    %124 = arith.addf %120, %123 : vector<64x64xf32>
    %c1_71 = arith.constant 1 : index
    %c0_72 = arith.constant 0 : index
    %c0_73 = arith.constant 0 : index
    %125 = vector.load %arg4[%c1_71, %c0_72, %c0_73] : memref<4x64x64xf32, #tpu.memory_space<vmem>>, vector<1x64x64xf32>
    %126 = vector.shape_cast %125 : vector<1x64x64xf32> to vector<64x64xf32>
    %cst_74 = arith.constant 0.000000e+00 : f32
    %127 = vector.broadcast %cst_74 : f32 to vector<8x64xf32>
    %128 = vector.extract_strided_slice %124 {offsets = [0, 0], sizes = [8, 64], strides = [1, 1]} : vector<64x64xf32> to vector<8x64xf32>
    %129 = vector.extract_strided_slice %124 {offsets = [56, 0], sizes = [8, 64], strides = [1, 1]} : vector<64x64xf32> to vector<8x64xf32>
    %130 = arith.select %10, %128, %129 : vector<8x64xi1>, vector<8x64xf32>
    %cst_75 = arith.constant dense<0.000000e+00> : vector<8x64xf32>
    %131 = tpu.matmul %127, %126, %cst_75 {dimension_numbers = #tpu.dot_dimension_numbers<[1], [0], [0], [1], [0, 0, 1, 1], [], []>} : vector<8x64xf32>, vector<64x64xf32>, vector<8x64xf32> -> vector<8x64xf32>
    %132 = arith.addf %130, %131 : vector<8x64xf32>
    %133 = math.tanh %132 : vector<8x64xf32>
    %c0_76 = arith.constant 0 : index
    %c0_77 = arith.constant 0 : index
    %134 = vector.load %arg1[%c0_76, %c0_77] : memref<64x64xf32, #tpu.memory_space<vmem>>, vector<8x64xf32>
    %135 = arith.mulf %133, %134 : vector<8x64xf32>
    %136 = vector.extract_strided_slice %135 {offsets = [0, 0], sizes = [8, 32], strides = [1, 1]} : vector<8x64xf32> to vector<8x32xf32>
    %c0_78 = arith.constant 0 : index
    %c0_79 = arith.constant 0 : index
    %137 = vector.load %arg10[%c0_78, %c0_79] : memref<64x64xf32, #tpu.memory_space<vmem>>, vector<8x32xf32>
    tpu.vector_store %arg10[%c0_78, %c0_79], %136 {strides = array<i32>} : memref<64x64xf32, #tpu.memory_space<vmem>>, vector<8x32xf32>,
    %138 = vector.extract_strided_slice %135 {offsets = [0, 32], sizes = [8, 32], strides = [1, 1]} : vector<8x64xf32> to vector<8x32xf32>
    %c56_80 = arith.constant 56 : index
    %c32_81 = arith.constant 32 : index
    %139 = vector.load %arg10[%c56_80, %c32_81] : memref<64x64xf32, #tpu.memory_space<vmem>>, vector<8x32xf32>
    tpu.vector_store %arg10[%c56_80, %c32_81], %138 {strides = array<i32>} : memref<64x64xf32, #tpu.memory_space<vmem>>, vector<8x32xf32>,
    %140 = vector.extract_strided_slice %124 {offsets = [8, 0], sizes = [8, 64], strides = [1, 1]} : vector<64x64xf32> to vector<8x64xf32>
    %141 = vector.extract_strided_slice %124 {offsets = [48, 0], sizes = [8, 64], strides = [1, 1]} : vector<64x64xf32> to vector<8x64xf32>
    %142 = arith.select %10, %140, %141 : vector<8x64xi1>, vector<8x64xf32>
    %cst_82 = arith.constant dense<0.000000e+00> : vector<8x64xf32>
    %143 = tpu.matmul %135, %126, %cst_82 {dimension_numbers = #tpu.dot_dimension_numbers<[1], [0], [0], [1], [0, 0, 1, 1], [], []>} : vector<8x64xf32>, vector<64x64xf32>, vector<8x64xf32> -> vector<8x64xf32>
    %144 = arith.addf %142, %143 : vector<8x64xf32>
    %145 = math.tanh %144 : vector<8x64xf32>
    %c8_83 = arith.constant 8 : index
    %c0_84 = arith.constant 0 : index
    %146 = vector.load %arg1[%c8_83, %c0_84] : memref<64x64xf32, #tpu.memory_space<vmem>>, vector<8x64xf32>
    %147 = arith.mulf %145, %146 : vector<8x64xf32>
    %148 = vector.extract_strided_slice %147 {offsets = [0, 0], sizes = [8, 32], strides = [1, 1]} : vector<8x64xf32> to vector<8x32xf32>
    %c8_85 = arith.constant 8 : index
    %c0_86 = arith.constant 0 : index
    %149 = vector.load %arg10[%c8_85, %c0_86] : memref<64x64xf32, #tpu.memory_space<vmem>>, vector<8x32xf32>
    tpu.vector_store %arg10[%c8_85, %c0_86], %148 {strides = array<i32>} : memref<64x64xf32, #tpu.memory_space<vmem>>, vector<8x32xf32>,
    %150 = vector.extract_strided_slice %147 {offsets = [0, 32], sizes = [8, 32], strides = [1, 1]} : vector<8x64xf32> to vector<8x32xf32>
    %c48_87 = arith.constant 48 : index
    %c32_88 = arith.constant 32 : index
    %151 = vector.load %arg10[%c48_87, %c32_88] : memref<64x64xf32, #tpu.memory_space<vmem>>, vector<8x32xf32>
    tpu.vector_store %arg10[%c48_87, %c32_88], %150 {strides = array<i32>} : memref<64x64xf32, #tpu.memory_space<vmem>>, vector<8x32xf32>,
    %152 = vector.extract_strided_slice %124 {offsets = [16, 0], sizes = [8, 64], strides = [1, 1]} : vector<64x64xf32> to vector<8x64xf32>
    %153 = vector.extract_strided_slice %124 {offsets = [40, 0], sizes = [8, 64], strides = [1, 1]} : vector<64x64xf32> to vector<8x64xf32>
    %154 = arith.select %10, %152, %153 : vector<8x64xi1>, vector<8x64xf32>
    %cst_89 = arith.constant dense<0.000000e+00> : vector<8x64xf32>
    %155 = tpu.matmul %147, %126, %cst_89 {dimension_numbers = #tpu.dot_dimension_numbers<[1], [0], [0], [1], [0, 0, 1, 1], [], []>} : vector<8x64xf32>, vector<64x64xf32>, vector<8x64xf32> -> vector<8x64xf32>
    %156 = arith.addf %154, %155 : vector<8x64xf32>
    %157 = math.tanh %156 : vector<8x64xf32>
    %c16_90 = arith.constant 16 : index
    %c0_91 = arith.constant 0 : index
    %158 = vector.load %arg1[%c16_90, %c0_91] : memref<64x64xf32, #tpu.memory_space<vmem>>, vector<8x64xf32>
    %159 = arith.mulf %157, %158 : vector<8x64xf32>
    %160 = vector.extract_strided_slice %159 {offsets = [0, 0], sizes = [8, 32], strides = [1, 1]} : vector<8x64xf32> to vector<8x32xf32>
    %c16_92 = arith.constant 16 : index
    %c0_93 = arith.constant 0 : index
    %161 = vector.load %arg10[%c16_92, %c0_93] : memref<64x64xf32, #tpu.memory_space<vmem>>, vector<8x32xf32>
    tpu.vector_store %arg10[%c16_92, %c0_93], %160 {strides = array<i32>} : memref<64x64xf32, #tpu.memory_space<vmem>>, vector<8x32xf32>,
    %162 = vector.extract_strided_slice %159 {offsets = [0, 32], sizes = [8, 32], strides = [1, 1]} : vector<8x64xf32> to vector<8x32xf32>
    %c40_94 = arith.constant 40 : index
    %c32_95 = arith.constant 32 : index
    %163 = vector.load %arg10[%c40_94, %c32_95] : memref<64x64xf32, #tpu.memory_space<vmem>>, vector<8x32xf32>
    tpu.vector_store %arg10[%c40_94, %c32_95], %162 {strides = array<i32>} : memref<64x64xf32, #tpu.memory_space<vmem>>, vector<8x32xf32>,
    %164 = vector.extract_strided_slice %124 {offsets = [24, 0], sizes = [8, 64], strides = [1, 1]} : vector<64x64xf32> to vector<8x64xf32>
    %165 = vector.extract_strided_slice %124 {offsets = [32, 0], sizes = [8, 64], strides = [1, 1]} : vector<64x64xf32> to vector<8x64xf32>
    %166 = arith.select %10, %164, %165 : vector<8x64xi1>, vector<8x64xf32>
    %cst_96 = arith.constant dense<0.000000e+00> : vector<8x64xf32>
    %167 = tpu.matmul %159, %126, %cst_96 {dimension_numbers = #tpu.dot_dimension_numbers<[1], [0], [0], [1], [0, 0, 1, 1], [], []>} : vector<8x64xf32>, vector<64x64xf32>, vector<8x64xf32> -> vector<8x64xf32>
    %168 = arith.addf %166, %167 : vector<8x64xf32>
    %169 = math.tanh %168 : vector<8x64xf32>
    %c24_97 = arith.constant 24 : index
    %c0_98 = arith.constant 0 : index
    %170 = vector.load %arg1[%c24_97, %c0_98] : memref<64x64xf32, #tpu.memory_space<vmem>>, vector<8x64xf32>
    %171 = arith.mulf %169, %170 : vector<8x64xf32>
    %172 = vector.extract_strided_slice %171 {offsets = [0, 0], sizes = [8, 32], strides = [1, 1]} : vector<8x64xf32> to vector<8x32xf32>
    %c24_99 = arith.constant 24 : index
    %c0_100 = arith.constant 0 : index
    %173 = vector.load %arg10[%c24_99, %c0_100] : memref<64x64xf32, #tpu.memory_space<vmem>>, vector<8x32xf32>
    tpu.vector_store %arg10[%c24_99, %c0_100], %172 {strides = array<i32>} : memref<64x64xf32, #tpu.memory_space<vmem>>, vector<8x32xf32>,
    %174 = vector.extract_strided_slice %171 {offsets = [0, 32], sizes = [8, 32], strides = [1, 1]} : vector<8x64xf32> to vector<8x32xf32>
    %c32_101 = arith.constant 32 : index
    %c32_102 = arith.constant 32 : index
    %175 = vector.load %arg10[%c32_101, %c32_102] : memref<64x64xf32, #tpu.memory_space<vmem>>, vector<8x32xf32>
    tpu.vector_store %arg10[%c32_101, %c32_102], %174 {strides = array<i32>} : memref<64x64xf32, #tpu.memory_space<vmem>>, vector<8x32xf32>,
    %176 = vector.extract_strided_slice %124 {offsets = [32, 0], sizes = [8, 64], strides = [1, 1]} : vector<64x64xf32> to vector<8x64xf32>
    %177 = vector.extract_strided_slice %124 {offsets = [24, 0], sizes = [8, 64], strides = [1, 1]} : vector<64x64xf32> to vector<8x64xf32>
    %178 = arith.select %10, %176, %177 : vector<8x64xi1>, vector<8x64xf32>
    %cst_103 = arith.constant dense<0.000000e+00> : vector<8x64xf32>
    %179 = tpu.matmul %171, %126, %cst_103 {dimension_numbers = #tpu.dot_dimension_numbers<[1], [0], [0], [1], [0, 0, 1, 1], [], []>} : vector<8x64xf32>, vector<64x64xf32>, vector<8x64xf32> -> vector<8x64xf32>
    %180 = arith.addf %178, %179 : vector<8x64xf32>
    %181 = math.tanh %180 : vector<8x64xf32>
    %c32_104 = arith.constant 32 : index
    %c0_105 = arith.constant 0 : index
    %182 = vector.load %arg1[%c32_104, %c0_105] : memref<64x64xf32, #tpu.memory_space<vmem>>, vector<8x64xf32>
    %183 = arith.mulf %181, %182 : vector<8x64xf32>
    %184 = vector.extract_strided_slice %183 {offsets = [0, 0], sizes = [8, 32], strides = [1, 1]} : vector<8x64xf32> to vector<8x32xf32>
    %c32_106 = arith.constant 32 : index
    %c0_107 = arith.constant 0 : index
    %185 = vector.load %arg10[%c32_106, %c0_107] : memref<64x64xf32, #tpu.memory_space<vmem>>, vector<8x32xf32>
    tpu.vector_store %arg10[%c32_106, %c0_107], %184 {strides = array<i32>} : memref<64x64xf32, #tpu.memory_space<vmem>>, vector<8x32xf32>,
    %186 = vector.extract_strided_slice %183 {offsets = [0, 32], sizes = [8, 32], strides = [1, 1]} : vector<8x64xf32> to vector<8x32xf32>
    %c24_108 = arith.constant 24 : index
    %c32_109 = arith.constant 32 : index
    %187 = vector.load %arg10[%c24_108, %c32_109] : memref<64x64xf32, #tpu.memory_space<vmem>>, vector<8x32xf32>
    tpu.vector_store %arg10[%c24_108, %c32_109], %186 {strides = array<i32>} : memref<64x64xf32, #tpu.memory_space<vmem>>, vector<8x32xf32>,
    %188 = vector.extract_strided_slice %124 {offsets = [40, 0], sizes = [8, 64], strides = [1, 1]} : vector<64x64xf32> to vector<8x64xf32>
    %189 = vector.extract_strided_slice %124 {offsets = [16, 0], sizes = [8, 64], strides = [1, 1]} : vector<64x64xf32> to vector<8x64xf32>
    %190 = arith.select %10, %188, %189 : vector<8x64xi1>, vector<8x64xf32>
    %cst_110 = arith.constant dense<0.000000e+00> : vector<8x64xf32>
    %191 = tpu.matmul %183, %126, %cst_110 {dimension_numbers = #tpu.dot_dimension_numbers<[1], [0], [0], [1], [0, 0, 1, 1], [], []>} : vector<8x64xf32>, vector<64x64xf32>, vector<8x64xf32> -> vector<8x64xf32>
    %192 = arith.addf %190, %191 : vector<8x64xf32>
    %193 = math.tanh %192 : vector<8x64xf32>
    %c40_111 = arith.constant 40 : index
    %c0_112 = arith.constant 0 : index
    %194 = vector.load %arg1[%c40_111, %c0_112] : memref<64x64xf32, #tpu.memory_space<vmem>>, vector<8x64xf32>
    %195 = arith.mulf %193, %194 : vector<8x64xf32>
    %196 = vector.extract_strided_slice %195 {offsets = [0, 0], sizes = [8, 32], strides = [1, 1]} : vector<8x64xf32> to vector<8x32xf32>
    %c40_113 = arith.constant 40 : index
    %c0_114 = arith.constant 0 : index
    %197 = vector.load %arg10[%c40_113, %c0_114] : memref<64x64xf32, #tpu.memory_space<vmem>>, vector<8x32xf32>
    tpu.vector_store %arg10[%c40_113, %c0_114], %196 {strides = array<i32>} : memref<64x64xf32, #tpu.memory_space<vmem>>, vector<8x32xf32>,
    %198 = vector.extract_strided_slice %195 {offsets = [0, 32], sizes = [8, 32], strides = [1, 1]} : vector<8x64xf32> to vector<8x32xf32>
    %c16_115 = arith.constant 16 : index
    %c32_116 = arith.constant 32 : index
    %199 = vector.load %arg10[%c16_115, %c32_116] : memref<64x64xf32, #tpu.memory_space<vmem>>, vector<8x32xf32>
    tpu.vector_store %arg10[%c16_115, %c32_116], %198 {strides = array<i32>} : memref<64x64xf32, #tpu.memory_space<vmem>>, vector<8x32xf32>,
    %200 = vector.extract_strided_slice %124 {offsets = [48, 0], sizes = [8, 64], strides = [1, 1]} : vector<64x64xf32> to vector<8x64xf32>
    %201 = vector.extract_strided_slice %124 {offsets = [8, 0], sizes = [8, 64], strides = [1, 1]} : vector<64x64xf32> to vector<8x64xf32>
    %202 = arith.select %10, %200, %201 : vector<8x64xi1>, vector<8x64xf32>
    %cst_117 = arith.constant dense<0.000000e+00> : vector<8x64xf32>
    %203 = tpu.matmul %195, %126, %cst_117 {dimension_numbers = #tpu.dot_dimension_numbers<[1], [0], [0], [1], [0, 0, 1, 1], [], []>} : vector<8x64xf32>, vector<64x64xf32>, vector<8x64xf32> -> vector<8x64xf32>
    %204 = arith.addf %202, %203 : vector<8x64xf32>
    %205 = math.tanh %204 : vector<8x64xf32>
    %c48_118 = arith.constant 48 : index
    %c0_119 = arith.constant 0 : index
    %206 = vector.load %arg1[%c48_118, %c0_119] : memref<64x64xf32, #tpu.memory_space<vmem>>, vector<8x64xf32>
    %207 = arith.mulf %205, %206 : vector<8x64xf32>
    %208 = vector.extract_strided_slice %207 {offsets = [0, 0], sizes = [8, 32], strides = [1, 1]} : vector<8x64xf32> to vector<8x32xf32>
    %c48_120 = arith.constant 48 : index
    %c0_121 = arith.constant 0 : index
    %209 = vector.load %arg10[%c48_120, %c0_121] : memref<64x64xf32, #tpu.memory_space<vmem>>, vector<8x32xf32>
    tpu.vector_store %arg10[%c48_120, %c0_121], %208 {strides = array<i32>} : memref<64x64xf32, #tpu.memory_space<vmem>>, vector<8x32xf32>,
    %210 = vector.extract_strided_slice %207 {offsets = [0, 32], sizes = [8, 32], strides = [1, 1]} : vector<8x64xf32> to vector<8x32xf32>
    %c8_122 = arith.constant 8 : index
    %c32_123 = arith.constant 32 : index
    %211 = vector.load %arg10[%c8_122, %c32_123] : memref<64x64xf32, #tpu.memory_space<vmem>>, vector<8x32xf32>
    tpu.vector_store %arg10[%c8_122, %c32_123], %210 {strides = array<i32>} : memref<64x64xf32, #tpu.memory_space<vmem>>, vector<8x32xf32>,
    %212 = vector.extract_strided_slice %124 {offsets = [56, 0], sizes = [8, 64], strides = [1, 1]} : vector<64x64xf32> to vector<8x64xf32>
    %213 = vector.extract_strided_slice %124 {offsets = [0, 0], sizes = [8, 64], strides = [1, 1]} : vector<64x64xf32> to vector<8x64xf32>
    %214 = arith.select %10, %212, %213 : vector<8x64xi1>, vector<8x64xf32>
    %cst_124 = arith.constant dense<0.000000e+00> : vector<8x64xf32>
    %215 = tpu.matmul %207, %126, %cst_124 {dimension_numbers = #tpu.dot_dimension_numbers<[1], [0], [0], [1], [0, 0, 1, 1], [], []>} : vector<8x64xf32>, vector<64x64xf32>, vector<8x64xf32> -> vector<8x64xf32>
    %216 = arith.addf %214, %215 : vector<8x64xf32>
    %217 = math.tanh %216 : vector<8x64xf32>
    %c56_125 = arith.constant 56 : index
    %c0_126 = arith.constant 0 : index
    %218 = vector.load %arg1[%c56_125, %c0_126] : memref<64x64xf32, #tpu.memory_space<vmem>>, vector<8x64xf32>
    %219 = arith.mulf %217, %218 : vector<8x64xf32>
    %220 = vector.extract_strided_slice %219 {offsets = [0, 0], sizes = [8, 32], strides = [1, 1]} : vector<8x64xf32> to vector<8x32xf32>
    %c56_127 = arith.constant 56 : index
    %c0_128 = arith.constant 0 : index
    %221 = vector.load %arg10[%c56_127, %c0_128] : memref<64x64xf32, #tpu.memory_space<vmem>>, vector<8x32xf32>
    tpu.vector_store %arg10[%c56_127, %c0_128], %220 {strides = array<i32>} : memref<64x64xf32, #tpu.memory_space<vmem>>, vector<8x32xf32>,
    %222 = vector.extract_strided_slice %219 {offsets = [0, 32], sizes = [8, 32], strides = [1, 1]} : vector<8x64xf32> to vector<8x32xf32>
    %c0_129 = arith.constant 0 : index
    %c32_130 = arith.constant 32 : index
    %223 = vector.load %arg10[%c0_129, %c32_130] : memref<64x64xf32, #tpu.memory_space<vmem>>, vector<8x32xf32>
    tpu.vector_store %arg10[%c0_129, %c32_130], %222 {strides = array<i32>} : memref<64x64xf32, #tpu.memory_space<vmem>>, vector<8x32xf32>,
    %c0_131 = arith.constant 0 : index
    %c0_132 = arith.constant 0 : index
    %224 = vector.load %arg10[%c0_131, %c0_132] : memref<64x64xf32, #tpu.memory_space<vmem>>, vector<64x64xf32>
    %c2 = arith.constant 2 : index
    %c0_133 = arith.constant 0 : index
    %c0_134 = arith.constant 0 : index
    %225 = vector.load %arg3[%c2, %c0_133, %c0_134] : memref<4x64x64xf32, #tpu.memory_space<vmem>>, vector<1x64x64xf32>
    %226 = vector.shape_cast %225 : vector<1x64x64xf32> to vector<64x64xf32>
    %cst_135 = arith.constant dense<0.000000e+00> : vector<64x64xf32>
    %227 = tpu.matmul %224, %226, %cst_135 {dimension_numbers = #tpu.dot_dimension_numbers<[1], [0], [0], [1], [0, 0, 1, 1], [], []>} : vector<64x64xf32>, vector<64x64xf32>, vector<64x64xf32> -> vector<64x64xf32>
    %c2_136 = arith.constant 2 : index
    %c0_137 = arith.constant 0 : index
    %c0_138 = arith.constant 0 : index
    %228 = vector.load %arg5[%c2_136, %c0_137, %c0_138] : memref<4x1x64xf32, #tpu.memory_space<vmem>>, vector<1x1x64xf32>
    %229 = vector.shape_cast %228 : vector<1x1x64xf32> to vector<1x64xf32>
    %230 = vector.broadcast %229 : vector<1x64xf32> to vector<64x64xf32>
    %231 = arith.addf %227, %230 : vector<64x64xf32>
    %c2_139 = arith.constant 2 : index
    %c0_140 = arith.constant 0 : index
    %c0_141 = arith.constant 0 : index
    %232 = vector.load %arg4[%c2_139, %c0_140, %c0_141] : memref<4x64x64xf32, #tpu.memory_space<vmem>>, vector<1x64x64xf32>
    %233 = vector.shape_cast %232 : vector<1x64x64xf32> to vector<64x64xf32>
    %cst_142 = arith.constant 0.000000e+00 : f32
    %234 = vector.broadcast %cst_142 : f32 to vector<8x64xf32>
    %235 = vector.extract_strided_slice %231 {offsets = [0, 0], sizes = [8, 64], strides = [1, 1]} : vector<64x64xf32> to vector<8x64xf32>
    %236 = vector.extract_strided_slice %231 {offsets = [56, 0], sizes = [8, 64], strides = [1, 1]} : vector<64x64xf32> to vector<8x64xf32>
    %237 = arith.select %10, %235, %236 : vector<8x64xi1>, vector<8x64xf32>
    %cst_143 = arith.constant dense<0.000000e+00> : vector<8x64xf32>
    %238 = tpu.matmul %234, %233, %cst_143 {dimension_numbers = #tpu.dot_dimension_numbers<[1], [0], [0], [1], [0, 0, 1, 1], [], []>} : vector<8x64xf32>, vector<64x64xf32>, vector<8x64xf32> -> vector<8x64xf32>
    %239 = arith.addf %237, %238 : vector<8x64xf32>
    %240 = math.tanh %239 : vector<8x64xf32>
    %c0_144 = arith.constant 0 : index
    %c0_145 = arith.constant 0 : index
    %241 = vector.load %arg1[%c0_144, %c0_145] : memref<64x64xf32, #tpu.memory_space<vmem>>, vector<8x64xf32>
    %242 = arith.mulf %240, %241 : vector<8x64xf32>
    %243 = vector.extract_strided_slice %242 {offsets = [0, 0], sizes = [8, 32], strides = [1, 1]} : vector<8x64xf32> to vector<8x32xf32>
    %c0_146 = arith.constant 0 : index
    %c0_147 = arith.constant 0 : index
    %244 = vector.load %arg9[%c0_146, %c0_147] : memref<64x64xf32, #tpu.memory_space<vmem>>, vector<8x32xf32>
    tpu.vector_store %arg9[%c0_146, %c0_147], %243 {strides = array<i32>} : memref<64x64xf32, #tpu.memory_space<vmem>>, vector<8x32xf32>,
    %245 = vector.extract_strided_slice %242 {offsets = [0, 32], sizes = [8, 32], strides = [1, 1]} : vector<8x64xf32> to vector<8x32xf32>
    %c56_148 = arith.constant 56 : index
    %c32_149 = arith.constant 32 : index
    %246 = vector.load %arg9[%c56_148, %c32_149] : memref<64x64xf32, #tpu.memory_space<vmem>>, vector<8x32xf32>
    tpu.vector_store %arg9[%c56_148, %c32_149], %245 {strides = array<i32>} : memref<64x64xf32, #tpu.memory_space<vmem>>, vector<8x32xf32>,
    %247 = vector.extract_strided_slice %231 {offsets = [8, 0], sizes = [8, 64], strides = [1, 1]} : vector<64x64xf32> to vector<8x64xf32>
    %248 = vector.extract_strided_slice %231 {offsets = [48, 0], sizes = [8, 64], strides = [1, 1]} : vector<64x64xf32> to vector<8x64xf32>
    %249 = arith.select %10, %247, %248 : vector<8x64xi1>, vector<8x64xf32>
    %cst_150 = arith.constant dense<0.000000e+00> : vector<8x64xf32>
    %250 = tpu.matmul %242, %233, %cst_150 {dimension_numbers = #tpu.dot_dimension_numbers<[1], [0], [0], [1], [0, 0, 1, 1], [], []>} : vector<8x64xf32>, vector<64x64xf32>, vector<8x64xf32> -> vector<8x64xf32>
    %251 = arith.addf %249, %250 : vector<8x64xf32>
    %252 = math.tanh %251 : vector<8x64xf32>
    %c8_151 = arith.constant 8 : index
    %c0_152 = arith.constant 0 : index
    %253 = vector.load %arg1[%c8_151, %c0_152] : memref<64x64xf32, #tpu.memory_space<vmem>>, vector<8x64xf32>
    %254 = arith.mulf %252, %253 : vector<8x64xf32>
    %255 = vector.extract_strided_slice %254 {offsets = [0, 0], sizes = [8, 32], strides = [1, 1]} : vector<8x64xf32> to vector<8x32xf32>
    %c8_153 = arith.constant 8 : index
    %c0_154 = arith.constant 0 : index
    %256 = vector.load %arg9[%c8_153, %c0_154] : memref<64x64xf32, #tpu.memory_space<vmem>>, vector<8x32xf32>
    tpu.vector_store %arg9[%c8_153, %c0_154], %255 {strides = array<i32>} : memref<64x64xf32, #tpu.memory_space<vmem>>, vector<8x32xf32>,
    %257 = vector.extract_strided_slice %254 {offsets = [0, 32], sizes = [8, 32], strides = [1, 1]} : vector<8x64xf32> to vector<8x32xf32>
    %c48_155 = arith.constant 48 : index
    %c32_156 = arith.constant 32 : index
    %258 = vector.load %arg9[%c48_155, %c32_156] : memref<64x64xf32, #tpu.memory_space<vmem>>, vector<8x32xf32>
    tpu.vector_store %arg9[%c48_155, %c32_156], %257 {strides = array<i32>} : memref<64x64xf32, #tpu.memory_space<vmem>>, vector<8x32xf32>,
    %259 = vector.extract_strided_slice %231 {offsets = [16, 0], sizes = [8, 64], strides = [1, 1]} : vector<64x64xf32> to vector<8x64xf32>
    %260 = vector.extract_strided_slice %231 {offsets = [40, 0], sizes = [8, 64], strides = [1, 1]} : vector<64x64xf32> to vector<8x64xf32>
    %261 = arith.select %10, %259, %260 : vector<8x64xi1>, vector<8x64xf32>
    %cst_157 = arith.constant dense<0.000000e+00> : vector<8x64xf32>
    %262 = tpu.matmul %254, %233, %cst_157 {dimension_numbers = #tpu.dot_dimension_numbers<[1], [0], [0], [1], [0, 0, 1, 1], [], []>} : vector<8x64xf32>, vector<64x64xf32>, vector<8x64xf32> -> vector<8x64xf32>
    %263 = arith.addf %261, %262 : vector<8x64xf32>
    %264 = math.tanh %263 : vector<8x64xf32>
    %c16_158 = arith.constant 16 : index
    %c0_159 = arith.constant 0 : index
    %265 = vector.load %arg1[%c16_158, %c0_159] : memref<64x64xf32, #tpu.memory_space<vmem>>, vector<8x64xf32>
    %266 = arith.mulf %264, %265 : vector<8x64xf32>
    %267 = vector.extract_strided_slice %266 {offsets = [0, 0], sizes = [8, 32], strides = [1, 1]} : vector<8x64xf32> to vector<8x32xf32>
    %c16_160 = arith.constant 16 : index
    %c0_161 = arith.constant 0 : index
    %268 = vector.load %arg9[%c16_160, %c0_161] : memref<64x64xf32, #tpu.memory_space<vmem>>, vector<8x32xf32>
    tpu.vector_store %arg9[%c16_160, %c0_161], %267 {strides = array<i32>} : memref<64x64xf32, #tpu.memory_space<vmem>>, vector<8x32xf32>,
    %269 = vector.extract_strided_slice %266 {offsets = [0, 32], sizes = [8, 32], strides = [1, 1]} : vector<8x64xf32> to vector<8x32xf32>
    %c40_162 = arith.constant 40 : index
    %c32_163 = arith.constant 32 : index
    %270 = vector.load %arg9[%c40_162, %c32_163] : memref<64x64xf32, #tpu.memory_space<vmem>>, vector<8x32xf32>
    tpu.vector_store %arg9[%c40_162, %c32_163], %269 {strides = array<i32>} : memref<64x64xf32, #tpu.memory_space<vmem>>, vector<8x32xf32>,
    %271 = vector.extract_strided_slice %231 {offsets = [24, 0], sizes = [8, 64], strides = [1, 1]} : vector<64x64xf32> to vector<8x64xf32>
    %272 = vector.extract_strided_slice %231 {offsets = [32, 0], sizes = [8, 64], strides = [1, 1]} : vector<64x64xf32> to vector<8x64xf32>
    %273 = arith.select %10, %271, %272 : vector<8x64xi1>, vector<8x64xf32>
    %cst_164 = arith.constant dense<0.000000e+00> : vector<8x64xf32>
    %274 = tpu.matmul %266, %233, %cst_164 {dimension_numbers = #tpu.dot_dimension_numbers<[1], [0], [0], [1], [0, 0, 1, 1], [], []>} : vector<8x64xf32>, vector<64x64xf32>, vector<8x64xf32> -> vector<8x64xf32>
    %275 = arith.addf %273, %274 : vector<8x64xf32>
    %276 = math.tanh %275 : vector<8x64xf32>
    %c24_165 = arith.constant 24 : index
    %c0_166 = arith.constant 0 : index
    %277 = vector.load %arg1[%c24_165, %c0_166] : memref<64x64xf32, #tpu.memory_space<vmem>>, vector<8x64xf32>
    %278 = arith.mulf %276, %277 : vector<8x64xf32>
    %279 = vector.extract_strided_slice %278 {offsets = [0, 0], sizes = [8, 32], strides = [1, 1]} : vector<8x64xf32> to vector<8x32xf32>
    %c24_167 = arith.constant 24 : index
    %c0_168 = arith.constant 0 : index
    %280 = vector.load %arg9[%c24_167, %c0_168] : memref<64x64xf32, #tpu.memory_space<vmem>>, vector<8x32xf32>
    tpu.vector_store %arg9[%c24_167, %c0_168], %279 {strides = array<i32>} : memref<64x64xf32, #tpu.memory_space<vmem>>, vector<8x32xf32>,
    %281 = vector.extract_strided_slice %278 {offsets = [0, 32], sizes = [8, 32], strides = [1, 1]} : vector<8x64xf32> to vector<8x32xf32>
    %c32_169 = arith.constant 32 : index
    %c32_170 = arith.constant 32 : index
    %282 = vector.load %arg9[%c32_169, %c32_170] : memref<64x64xf32, #tpu.memory_space<vmem>>, vector<8x32xf32>
    tpu.vector_store %arg9[%c32_169, %c32_170], %281 {strides = array<i32>} : memref<64x64xf32, #tpu.memory_space<vmem>>, vector<8x32xf32>,
    %283 = vector.extract_strided_slice %231 {offsets = [32, 0], sizes = [8, 64], strides = [1, 1]} : vector<64x64xf32> to vector<8x64xf32>
    %284 = vector.extract_strided_slice %231 {offsets = [24, 0], sizes = [8, 64], strides = [1, 1]} : vector<64x64xf32> to vector<8x64xf32>
    %285 = arith.select %10, %283, %284 : vector<8x64xi1>, vector<8x64xf32>
    %cst_171 = arith.constant dense<0.000000e+00> : vector<8x64xf32>
    %286 = tpu.matmul %278, %233, %cst_171 {dimension_numbers = #tpu.dot_dimension_numbers<[1], [0], [0], [1], [0, 0, 1, 1], [], []>} : vector<8x64xf32>, vector<64x64xf32>, vector<8x64xf32> -> vector<8x64xf32>
    %287 = arith.addf %285, %286 : vector<8x64xf32>
    %288 = math.tanh %287 : vector<8x64xf32>
    %c32_172 = arith.constant 32 : index
    %c0_173 = arith.constant 0 : index
    %289 = vector.load %arg1[%c32_172, %c0_173] : memref<64x64xf32, #tpu.memory_space<vmem>>, vector<8x64xf32>
    %290 = arith.mulf %288, %289 : vector<8x64xf32>
    %291 = vector.extract_strided_slice %290 {offsets = [0, 0], sizes = [8, 32], strides = [1, 1]} : vector<8x64xf32> to vector<8x32xf32>
    %c32_174 = arith.constant 32 : index
    %c0_175 = arith.constant 0 : index
    %292 = vector.load %arg9[%c32_174, %c0_175] : memref<64x64xf32, #tpu.memory_space<vmem>>, vector<8x32xf32>
    tpu.vector_store %arg9[%c32_174, %c0_175], %291 {strides = array<i32>} : memref<64x64xf32, #tpu.memory_space<vmem>>, vector<8x32xf32>,
    %293 = vector.extract_strided_slice %290 {offsets = [0, 32], sizes = [8, 32], strides = [1, 1]} : vector<8x64xf32> to vector<8x32xf32>
    %c24_176 = arith.constant 24 : index
    %c32_177 = arith.constant 32 : index
    %294 = vector.load %arg9[%c24_176, %c32_177] : memref<64x64xf32, #tpu.memory_space<vmem>>, vector<8x32xf32>
    tpu.vector_store %arg9[%c24_176, %c32_177], %293 {strides = array<i32>} : memref<64x64xf32, #tpu.memory_space<vmem>>, vector<8x32xf32>,
    %295 = vector.extract_strided_slice %231 {offsets = [40, 0], sizes = [8, 64], strides = [1, 1]} : vector<64x64xf32> to vector<8x64xf32>
    %296 = vector.extract_strided_slice %231 {offsets = [16, 0], sizes = [8, 64], strides = [1, 1]} : vector<64x64xf32> to vector<8x64xf32>
    %297 = arith.select %10, %295, %296 : vector<8x64xi1>, vector<8x64xf32>
    %cst_178 = arith.constant dense<0.000000e+00> : vector<8x64xf32>
    %298 = tpu.matmul %290, %233, %cst_178 {dimension_numbers = #tpu.dot_dimension_numbers<[1], [0], [0], [1], [0, 0, 1, 1], [], []>} : vector<8x64xf32>, vector<64x64xf32>, vector<8x64xf32> -> vector<8x64xf32>
    %299 = arith.addf %297, %298 : vector<8x64xf32>
    %300 = math.tanh %299 : vector<8x64xf32>
    %c40_179 = arith.constant 40 : index
    %c0_180 = arith.constant 0 : index
    %301 = vector.load %arg1[%c40_179, %c0_180] : memref<64x64xf32, #tpu.memory_space<vmem>>, vector<8x64xf32>
    %302 = arith.mulf %300, %301 : vector<8x64xf32>
    %303 = vector.extract_strided_slice %302 {offsets = [0, 0], sizes = [8, 32], strides = [1, 1]} : vector<8x64xf32> to vector<8x32xf32>
    %c40_181 = arith.constant 40 : index
    %c0_182 = arith.constant 0 : index
    %304 = vector.load %arg9[%c40_181, %c0_182] : memref<64x64xf32, #tpu.memory_space<vmem>>, vector<8x32xf32>
    tpu.vector_store %arg9[%c40_181, %c0_182], %303 {strides = array<i32>} : memref<64x64xf32, #tpu.memory_space<vmem>>, vector<8x32xf32>,
    %305 = vector.extract_strided_slice %302 {offsets = [0, 32], sizes = [8, 32], strides = [1, 1]} : vector<8x64xf32> to vector<8x32xf32>
    %c16_183 = arith.constant 16 : index
    %c32_184 = arith.constant 32 : index
    %306 = vector.load %arg9[%c16_183, %c32_184] : memref<64x64xf32, #tpu.memory_space<vmem>>, vector<8x32xf32>
    tpu.vector_store %arg9[%c16_183, %c32_184], %305 {strides = array<i32>} : memref<64x64xf32, #tpu.memory_space<vmem>>, vector<8x32xf32>,
    %307 = vector.extract_strided_slice %231 {offsets = [48, 0], sizes = [8, 64], strides = [1, 1]} : vector<64x64xf32> to vector<8x64xf32>
    %308 = vector.extract_strided_slice %231 {offsets = [8, 0], sizes = [8, 64], strides = [1, 1]} : vector<64x64xf32> to vector<8x64xf32>
    %309 = arith.select %10, %307, %308 : vector<8x64xi1>, vector<8x64xf32>
    %cst_185 = arith.constant dense<0.000000e+00> : vector<8x64xf32>
    %310 = tpu.matmul %302, %233, %cst_185 {dimension_numbers = #tpu.dot_dimension_numbers<[1], [0], [0], [1], [0, 0, 1, 1], [], []>} : vector<8x64xf32>, vector<64x64xf32>, vector<8x64xf32> -> vector<8x64xf32>
    %311 = arith.addf %309, %310 : vector<8x64xf32>
    %312 = math.tanh %311 : vector<8x64xf32>
    %c48_186 = arith.constant 48 : index
    %c0_187 = arith.constant 0 : index
    %313 = vector.load %arg1[%c48_186, %c0_187] : memref<64x64xf32, #tpu.memory_space<vmem>>, vector<8x64xf32>
    %314 = arith.mulf %312, %313 : vector<8x64xf32>
    %315 = vector.extract_strided_slice %314 {offsets = [0, 0], sizes = [8, 32], strides = [1, 1]} : vector<8x64xf32> to vector<8x32xf32>
    %c48_188 = arith.constant 48 : index
    %c0_189 = arith.constant 0 : index
    %316 = vector.load %arg9[%c48_188, %c0_189] : memref<64x64xf32, #tpu.memory_space<vmem>>, vector<8x32xf32>
    tpu.vector_store %arg9[%c48_188, %c0_189], %315 {strides = array<i32>} : memref<64x64xf32, #tpu.memory_space<vmem>>, vector<8x32xf32>,
    %317 = vector.extract_strided_slice %314 {offsets = [0, 32], sizes = [8, 32], strides = [1, 1]} : vector<8x64xf32> to vector<8x32xf32>
    %c8_190 = arith.constant 8 : index
    %c32_191 = arith.constant 32 : index
    %318 = vector.load %arg9[%c8_190, %c32_191] : memref<64x64xf32, #tpu.memory_space<vmem>>, vector<8x32xf32>
    tpu.vector_store %arg9[%c8_190, %c32_191], %317 {strides = array<i32>} : memref<64x64xf32, #tpu.memory_space<vmem>>, vector<8x32xf32>,
    %319 = vector.extract_strided_slice %231 {offsets = [56, 0], sizes = [8, 64], strides = [1, 1]} : vector<64x64xf32> to vector<8x64xf32>
    %320 = vector.extract_strided_slice %231 {offsets = [0, 0], sizes = [8, 64], strides = [1, 1]} : vector<64x64xf32> to vector<8x64xf32>
    %321 = arith.select %10, %319, %320 : vector<8x64xi1>, vector<8x64xf32>
    %cst_192 = arith.constant dense<0.000000e+00> : vector<8x64xf32>
    %322 = tpu.matmul %314, %233, %cst_192 {dimension_numbers = #tpu.dot_dimension_numbers<[1], [0], [0], [1], [0, 0, 1, 1], [], []>} : vector<8x64xf32>, vector<64x64xf32>, vector<8x64xf32> -> vector<8x64xf32>
    %323 = arith.addf %321, %322 : vector<8x64xf32>
    %324 = math.tanh %323 : vector<8x64xf32>
    %c56_193 = arith.constant 56 : index
    %c0_194 = arith.constant 0 : index
    %325 = vector.load %arg1[%c56_193, %c0_194] : memref<64x64xf32, #tpu.memory_space<vmem>>, vector<8x64xf32>
    %326 = arith.mulf %324, %325 : vector<8x64xf32>
    %327 = vector.extract_strided_slice %326 {offsets = [0, 0], sizes = [8, 32], strides = [1, 1]} : vector<8x64xf32> to vector<8x32xf32>
    %c56_195 = arith.constant 56 : index
    %c0_196 = arith.constant 0 : index
    %328 = vector.load %arg9[%c56_195, %c0_196] : memref<64x64xf32, #tpu.memory_space<vmem>>, vector<8x32xf32>
    tpu.vector_store %arg9[%c56_195, %c0_196], %327 {strides = array<i32>} : memref<64x64xf32, #tpu.memory_space<vmem>>, vector<8x32xf32>,
    %329 = vector.extract_strided_slice %326 {offsets = [0, 32], sizes = [8, 32], strides = [1, 1]} : vector<8x64xf32> to vector<8x32xf32>
    %c0_197 = arith.constant 0 : index
    %c32_198 = arith.constant 32 : index
    %330 = vector.load %arg9[%c0_197, %c32_198] : memref<64x64xf32, #tpu.memory_space<vmem>>, vector<8x32xf32>
    tpu.vector_store %arg9[%c0_197, %c32_198], %329 {strides = array<i32>} : memref<64x64xf32, #tpu.memory_space<vmem>>, vector<8x32xf32>,
    %c0_199 = arith.constant 0 : index
    %c0_200 = arith.constant 0 : index
    %331 = vector.load %arg9[%c0_199, %c0_200] : memref<64x64xf32, #tpu.memory_space<vmem>>, vector<64x64xf32>
    %c3 = arith.constant 3 : index
    %c0_201 = arith.constant 0 : index
    %c0_202 = arith.constant 0 : index
    %332 = vector.load %arg3[%c3, %c0_201, %c0_202] : memref<4x64x64xf32, #tpu.memory_space<vmem>>, vector<1x64x64xf32>
    %333 = vector.shape_cast %332 : vector<1x64x64xf32> to vector<64x64xf32>
    %cst_203 = arith.constant dense<0.000000e+00> : vector<64x64xf32>
    %334 = tpu.matmul %331, %333, %cst_203 {dimension_numbers = #tpu.dot_dimension_numbers<[1], [0], [0], [1], [0, 0, 1, 1], [], []>} : vector<64x64xf32>, vector<64x64xf32>, vector<64x64xf32> -> vector<64x64xf32>
    %c3_204 = arith.constant 3 : index
    %c0_205 = arith.constant 0 : index
    %c0_206 = arith.constant 0 : index
    %335 = vector.load %arg5[%c3_204, %c0_205, %c0_206] : memref<4x1x64xf32, #tpu.memory_space<vmem>>, vector<1x1x64xf32>
    %336 = vector.shape_cast %335 : vector<1x1x64xf32> to vector<1x64xf32>
    %337 = vector.broadcast %336 : vector<1x64xf32> to vector<64x64xf32>
    %338 = arith.addf %334, %337 : vector<64x64xf32>
    %c3_207 = arith.constant 3 : index
    %c0_208 = arith.constant 0 : index
    %c0_209 = arith.constant 0 : index
    %339 = vector.load %arg4[%c3_207, %c0_208, %c0_209] : memref<4x64x64xf32, #tpu.memory_space<vmem>>, vector<1x64x64xf32>
    %340 = vector.shape_cast %339 : vector<1x64x64xf32> to vector<64x64xf32>
    %cst_210 = arith.constant 0.000000e+00 : f32
    %341 = vector.broadcast %cst_210 : f32 to vector<8x64xf32>
    %342 = vector.extract_strided_slice %338 {offsets = [0, 0], sizes = [8, 64], strides = [1, 1]} : vector<64x64xf32> to vector<8x64xf32>
    %343 = vector.extract_strided_slice %338 {offsets = [56, 0], sizes = [8, 64], strides = [1, 1]} : vector<64x64xf32> to vector<8x64xf32>
    %344 = arith.select %10, %342, %343 : vector<8x64xi1>, vector<8x64xf32>
    %cst_211 = arith.constant dense<0.000000e+00> : vector<8x64xf32>
    %345 = tpu.matmul %341, %340, %cst_211 {dimension_numbers = #tpu.dot_dimension_numbers<[1], [0], [0], [1], [0, 0, 1, 1], [], []>} : vector<8x64xf32>, vector<64x64xf32>, vector<8x64xf32> -> vector<8x64xf32>
    %346 = arith.addf %344, %345 : vector<8x64xf32>
    %347 = math.tanh %346 : vector<8x64xf32>
    %c0_212 = arith.constant 0 : index
    %c0_213 = arith.constant 0 : index
    %348 = vector.load %arg1[%c0_212, %c0_213] : memref<64x64xf32, #tpu.memory_space<vmem>>, vector<8x64xf32>
    %349 = arith.mulf %347, %348 : vector<8x64xf32>
    %350 = vector.extract_strided_slice %349 {offsets = [0, 0], sizes = [8, 32], strides = [1, 1]} : vector<8x64xf32> to vector<8x32xf32>
    %c0_214 = arith.constant 0 : index
    %c0_215 = arith.constant 0 : index
    %351 = vector.load %arg10[%c0_214, %c0_215] : memref<64x64xf32, #tpu.memory_space<vmem>>, vector<8x32xf32>
    tpu.vector_store %arg10[%c0_214, %c0_215], %350 {strides = array<i32>} : memref<64x64xf32, #tpu.memory_space<vmem>>, vector<8x32xf32>,
    %352 = vector.extract_strided_slice %349 {offsets = [0, 32], sizes = [8, 32], strides = [1, 1]} : vector<8x64xf32> to vector<8x32xf32>
    %c56_216 = arith.constant 56 : index
    %c32_217 = arith.constant 32 : index
    %353 = vector.load %arg10[%c56_216, %c32_217] : memref<64x64xf32, #tpu.memory_space<vmem>>, vector<8x32xf32>
    tpu.vector_store %arg10[%c56_216, %c32_217], %352 {strides = array<i32>} : memref<64x64xf32, #tpu.memory_space<vmem>>, vector<8x32xf32>,
    %354 = vector.extract_strided_slice %338 {offsets = [8, 0], sizes = [8, 64], strides = [1, 1]} : vector<64x64xf32> to vector<8x64xf32>
    %355 = vector.extract_strided_slice %338 {offsets = [48, 0], sizes = [8, 64], strides = [1, 1]} : vector<64x64xf32> to vector<8x64xf32>
    %356 = arith.select %10, %354, %355 : vector<8x64xi1>, vector<8x64xf32>
    %cst_218 = arith.constant dense<0.000000e+00> : vector<8x64xf32>
    %357 = tpu.matmul %349, %340, %cst_218 {dimension_numbers = #tpu.dot_dimension_numbers<[1], [0], [0], [1], [0, 0, 1, 1], [], []>} : vector<8x64xf32>, vector<64x64xf32>, vector<8x64xf32> -> vector<8x64xf32>
    %358 = arith.addf %356, %357 : vector<8x64xf32>
    %359 = math.tanh %358 : vector<8x64xf32>
    %c8_219 = arith.constant 8 : index
    %c0_220 = arith.constant 0 : index
    %360 = vector.load %arg1[%c8_219, %c0_220] : memref<64x64xf32, #tpu.memory_space<vmem>>, vector<8x64xf32>
    %361 = arith.mulf %359, %360 : vector<8x64xf32>
    %362 = vector.extract_strided_slice %361 {offsets = [0, 0], sizes = [8, 32], strides = [1, 1]} : vector<8x64xf32> to vector<8x32xf32>
    %c8_221 = arith.constant 8 : index
    %c0_222 = arith.constant 0 : index
    %363 = vector.load %arg10[%c8_221, %c0_222] : memref<64x64xf32, #tpu.memory_space<vmem>>, vector<8x32xf32>
    tpu.vector_store %arg10[%c8_221, %c0_222], %362 {strides = array<i32>} : memref<64x64xf32, #tpu.memory_space<vmem>>, vector<8x32xf32>,
    %364 = vector.extract_strided_slice %361 {offsets = [0, 32], sizes = [8, 32], strides = [1, 1]} : vector<8x64xf32> to vector<8x32xf32>
    %c48_223 = arith.constant 48 : index
    %c32_224 = arith.constant 32 : index
    %365 = vector.load %arg10[%c48_223, %c32_224] : memref<64x64xf32, #tpu.memory_space<vmem>>, vector<8x32xf32>
    tpu.vector_store %arg10[%c48_223, %c32_224], %364 {strides = array<i32>} : memref<64x64xf32, #tpu.memory_space<vmem>>, vector<8x32xf32>,
    %366 = vector.extract_strided_slice %338 {offsets = [16, 0], sizes = [8, 64], strides = [1, 1]} : vector<64x64xf32> to vector<8x64xf32>
    %367 = vector.extract_strided_slice %338 {offsets = [40, 0], sizes = [8, 64], strides = [1, 1]} : vector<64x64xf32> to vector<8x64xf32>
    %368 = arith.select %10, %366, %367 : vector<8x64xi1>, vector<8x64xf32>
    %cst_225 = arith.constant dense<0.000000e+00> : vector<8x64xf32>
    %369 = tpu.matmul %361, %340, %cst_225 {dimension_numbers = #tpu.dot_dimension_numbers<[1], [0], [0], [1], [0, 0, 1, 1], [], []>} : vector<8x64xf32>, vector<64x64xf32>, vector<8x64xf32> -> vector<8x64xf32>
    %370 = arith.addf %368, %369 : vector<8x64xf32>
    %371 = math.tanh %370 : vector<8x64xf32>
    %c16_226 = arith.constant 16 : index
    %c0_227 = arith.constant 0 : index
    %372 = vector.load %arg1[%c16_226, %c0_227] : memref<64x64xf32, #tpu.memory_space<vmem>>, vector<8x64xf32>
    %373 = arith.mulf %371, %372 : vector<8x64xf32>
    %374 = vector.extract_strided_slice %373 {offsets = [0, 0], sizes = [8, 32], strides = [1, 1]} : vector<8x64xf32> to vector<8x32xf32>
    %c16_228 = arith.constant 16 : index
    %c0_229 = arith.constant 0 : index
    %375 = vector.load %arg10[%c16_228, %c0_229] : memref<64x64xf32, #tpu.memory_space<vmem>>, vector<8x32xf32>
    tpu.vector_store %arg10[%c16_228, %c0_229], %374 {strides = array<i32>} : memref<64x64xf32, #tpu.memory_space<vmem>>, vector<8x32xf32>,
    %376 = vector.extract_strided_slice %373 {offsets = [0, 32], sizes = [8, 32], strides = [1, 1]} : vector<8x64xf32> to vector<8x32xf32>
    %c40_230 = arith.constant 40 : index
    %c32_231 = arith.constant 32 : index
    %377 = vector.load %arg10[%c40_230, %c32_231] : memref<64x64xf32, #tpu.memory_space<vmem>>, vector<8x32xf32>
    tpu.vector_store %arg10[%c40_230, %c32_231], %376 {strides = array<i32>} : memref<64x64xf32, #tpu.memory_space<vmem>>, vector<8x32xf32>,
    %378 = vector.extract_strided_slice %338 {offsets = [24, 0], sizes = [8, 64], strides = [1, 1]} : vector<64x64xf32> to vector<8x64xf32>
    %379 = vector.extract_strided_slice %338 {offsets = [32, 0], sizes = [8, 64], strides = [1, 1]} : vector<64x64xf32> to vector<8x64xf32>
    %380 = arith.select %10, %378, %379 : vector<8x64xi1>, vector<8x64xf32>
    %cst_232 = arith.constant dense<0.000000e+00> : vector<8x64xf32>
    %381 = tpu.matmul %373, %340, %cst_232 {dimension_numbers = #tpu.dot_dimension_numbers<[1], [0], [0], [1], [0, 0, 1, 1], [], []>} : vector<8x64xf32>, vector<64x64xf32>, vector<8x64xf32> -> vector<8x64xf32>
    %382 = arith.addf %380, %381 : vector<8x64xf32>
    %383 = math.tanh %382 : vector<8x64xf32>
    %c24_233 = arith.constant 24 : index
    %c0_234 = arith.constant 0 : index
    %384 = vector.load %arg1[%c24_233, %c0_234] : memref<64x64xf32, #tpu.memory_space<vmem>>, vector<8x64xf32>
    %385 = arith.mulf %383, %384 : vector<8x64xf32>
    %386 = vector.extract_strided_slice %385 {offsets = [0, 0], sizes = [8, 32], strides = [1, 1]} : vector<8x64xf32> to vector<8x32xf32>
    %c24_235 = arith.constant 24 : index
    %c0_236 = arith.constant 0 : index
    %387 = vector.load %arg10[%c24_235, %c0_236] : memref<64x64xf32, #tpu.memory_space<vmem>>, vector<8x32xf32>
    tpu.vector_store %arg10[%c24_235, %c0_236], %386 {strides = array<i32>} : memref<64x64xf32, #tpu.memory_space<vmem>>, vector<8x32xf32>,
    %388 = vector.extract_strided_slice %385 {offsets = [0, 32], sizes = [8, 32], strides = [1, 1]} : vector<8x64xf32> to vector<8x32xf32>
    %c32_237 = arith.constant 32 : index
    %c32_238 = arith.constant 32 : index
    %389 = vector.load %arg10[%c32_237, %c32_238] : memref<64x64xf32, #tpu.memory_space<vmem>>, vector<8x32xf32>
    tpu.vector_store %arg10[%c32_237, %c32_238], %388 {strides = array<i32>} : memref<64x64xf32, #tpu.memory_space<vmem>>, vector<8x32xf32>,
    %390 = vector.extract_strided_slice %338 {offsets = [32, 0], sizes = [8, 64], strides = [1, 1]} : vector<64x64xf32> to vector<8x64xf32>
    %391 = vector.extract_strided_slice %338 {offsets = [24, 0], sizes = [8, 64], strides = [1, 1]} : vector<64x64xf32> to vector<8x64xf32>
    %392 = arith.select %10, %390, %391 : vector<8x64xi1>, vector<8x64xf32>
    %cst_239 = arith.constant dense<0.000000e+00> : vector<8x64xf32>
    %393 = tpu.matmul %385, %340, %cst_239 {dimension_numbers = #tpu.dot_dimension_numbers<[1], [0], [0], [1], [0, 0, 1, 1], [], []>} : vector<8x64xf32>, vector<64x64xf32>, vector<8x64xf32> -> vector<8x64xf32>
    %394 = arith.addf %392, %393 : vector<8x64xf32>
    %395 = math.tanh %394 : vector<8x64xf32>
    %c32_240 = arith.constant 32 : index
    %c0_241 = arith.constant 0 : index
    %396 = vector.load %arg1[%c32_240, %c0_241] : memref<64x64xf32, #tpu.memory_space<vmem>>, vector<8x64xf32>
    %397 = arith.mulf %395, %396 : vector<8x64xf32>
    %398 = vector.extract_strided_slice %397 {offsets = [0, 0], sizes = [8, 32], strides = [1, 1]} : vector<8x64xf32> to vector<8x32xf32>
    %c32_242 = arith.constant 32 : index
    %c0_243 = arith.constant 0 : index
    %399 = vector.load %arg10[%c32_242, %c0_243] : memref<64x64xf32, #tpu.memory_space<vmem>>, vector<8x32xf32>
    tpu.vector_store %arg10[%c32_242, %c0_243], %398 {strides = array<i32>} : memref<64x64xf32, #tpu.memory_space<vmem>>, vector<8x32xf32>,
    %400 = vector.extract_strided_slice %397 {offsets = [0, 32], sizes = [8, 32], strides = [1, 1]} : vector<8x64xf32> to vector<8x32xf32>
    %c24_244 = arith.constant 24 : index
    %c32_245 = arith.constant 32 : index
    %401 = vector.load %arg10[%c24_244, %c32_245] : memref<64x64xf32, #tpu.memory_space<vmem>>, vector<8x32xf32>
    tpu.vector_store %arg10[%c24_244, %c32_245], %400 {strides = array<i32>} : memref<64x64xf32, #tpu.memory_space<vmem>>, vector<8x32xf32>,
    %402 = vector.extract_strided_slice %338 {offsets = [40, 0], sizes = [8, 64], strides = [1, 1]} : vector<64x64xf32> to vector<8x64xf32>
    %403 = vector.extract_strided_slice %338 {offsets = [16, 0], sizes = [8, 64], strides = [1, 1]} : vector<64x64xf32> to vector<8x64xf32>
    %404 = arith.select %10, %402, %403 : vector<8x64xi1>, vector<8x64xf32>
    %cst_246 = arith.constant dense<0.000000e+00> : vector<8x64xf32>
    %405 = tpu.matmul %397, %340, %cst_246 {dimension_numbers = #tpu.dot_dimension_numbers<[1], [0], [0], [1], [0, 0, 1, 1], [], []>} : vector<8x64xf32>, vector<64x64xf32>, vector<8x64xf32> -> vector<8x64xf32>
    %406 = arith.addf %404, %405 : vector<8x64xf32>
    %407 = math.tanh %406 : vector<8x64xf32>
    %c40_247 = arith.constant 40 : index
    %c0_248 = arith.constant 0 : index
    %408 = vector.load %arg1[%c40_247, %c0_248] : memref<64x64xf32, #tpu.memory_space<vmem>>, vector<8x64xf32>
    %409 = arith.mulf %407, %408 : vector<8x64xf32>
    %410 = vector.extract_strided_slice %409 {offsets = [0, 0], sizes = [8, 32], strides = [1, 1]} : vector<8x64xf32> to vector<8x32xf32>
    %c40_249 = arith.constant 40 : index
    %c0_250 = arith.constant 0 : index
    %411 = vector.load %arg10[%c40_249, %c0_250] : memref<64x64xf32, #tpu.memory_space<vmem>>, vector<8x32xf32>
    tpu.vector_store %arg10[%c40_249, %c0_250], %410 {strides = array<i32>} : memref<64x64xf32, #tpu.memory_space<vmem>>, vector<8x32xf32>,
    %412 = vector.extract_strided_slice %409 {offsets = [0, 32], sizes = [8, 32], strides = [1, 1]} : vector<8x64xf32> to vector<8x32xf32>
    %c16_251 = arith.constant 16 : index
    %c32_252 = arith.constant 32 : index
    %413 = vector.load %arg10[%c16_251, %c32_252] : memref<64x64xf32, #tpu.memory_space<vmem>>, vector<8x32xf32>
    tpu.vector_store %arg10[%c16_251, %c32_252], %412 {strides = array<i32>} : memref<64x64xf32, #tpu.memory_space<vmem>>, vector<8x32xf32>,
    %414 = vector.extract_strided_slice %338 {offsets = [48, 0], sizes = [8, 64], strides = [1, 1]} : vector<64x64xf32> to vector<8x64xf32>
    %415 = vector.extract_strided_slice %338 {offsets = [8, 0], sizes = [8, 64], strides = [1, 1]} : vector<64x64xf32> to vector<8x64xf32>
    %416 = arith.select %10, %414, %415 : vector<8x64xi1>, vector<8x64xf32>
    %cst_253 = arith.constant dense<0.000000e+00> : vector<8x64xf32>
    %417 = tpu.matmul %409, %340, %cst_253 {dimension_numbers = #tpu.dot_dimension_numbers<[1], [0], [0], [1], [0, 0, 1, 1], [], []>} : vector<8x64xf32>, vector<64x64xf32>, vector<8x64xf32> -> vector<8x64xf32>
    %418 = arith.addf %416, %417 : vector<8x64xf32>
    %419 = math.tanh %418 : vector<8x64xf32>
    %c48_254 = arith.constant 48 : index
    %c0_255 = arith.constant 0 : index
    %420 = vector.load %arg1[%c48_254, %c0_255] : memref<64x64xf32, #tpu.memory_space<vmem>>, vector<8x64xf32>
    %421 = arith.mulf %419, %420 : vector<8x64xf32>
    %422 = vector.extract_strided_slice %421 {offsets = [0, 0], sizes = [8, 32], strides = [1, 1]} : vector<8x64xf32> to vector<8x32xf32>
    %c48_256 = arith.constant 48 : index
    %c0_257 = arith.constant 0 : index
    %423 = vector.load %arg10[%c48_256, %c0_257] : memref<64x64xf32, #tpu.memory_space<vmem>>, vector<8x32xf32>
    tpu.vector_store %arg10[%c48_256, %c0_257], %422 {strides = array<i32>} : memref<64x64xf32, #tpu.memory_space<vmem>>, vector<8x32xf32>,
    %424 = vector.extract_strided_slice %421 {offsets = [0, 32], sizes = [8, 32], strides = [1, 1]} : vector<8x64xf32> to vector<8x32xf32>
    %c8_258 = arith.constant 8 : index
    %c32_259 = arith.constant 32 : index
    %425 = vector.load %arg10[%c8_258, %c32_259] : memref<64x64xf32, #tpu.memory_space<vmem>>, vector<8x32xf32>
    tpu.vector_store %arg10[%c8_258, %c32_259], %424 {strides = array<i32>} : memref<64x64xf32, #tpu.memory_space<vmem>>, vector<8x32xf32>,
    %426 = vector.extract_strided_slice %338 {offsets = [56, 0], sizes = [8, 64], strides = [1, 1]} : vector<64x64xf32> to vector<8x64xf32>
    %427 = vector.extract_strided_slice %338 {offsets = [0, 0], sizes = [8, 64], strides = [1, 1]} : vector<64x64xf32> to vector<8x64xf32>
    %428 = arith.select %10, %426, %427 : vector<8x64xi1>, vector<8x64xf32>
    %cst_260 = arith.constant dense<0.000000e+00> : vector<8x64xf32>
    %429 = tpu.matmul %421, %340, %cst_260 {dimension_numbers = #tpu.dot_dimension_numbers<[1], [0], [0], [1], [0, 0, 1, 1], [], []>} : vector<8x64xf32>, vector<64x64xf32>, vector<8x64xf32> -> vector<8x64xf32>
    %430 = arith.addf %428, %429 : vector<8x64xf32>
    %431 = math.tanh %430 : vector<8x64xf32>
    %c56_261 = arith.constant 56 : index
    %c0_262 = arith.constant 0 : index
    %432 = vector.load %arg1[%c56_261, %c0_262] : memref<64x64xf32, #tpu.memory_space<vmem>>, vector<8x64xf32>
    %433 = arith.mulf %431, %432 : vector<8x64xf32>
    %434 = vector.extract_strided_slice %433 {offsets = [0, 0], sizes = [8, 32], strides = [1, 1]} : vector<8x64xf32> to vector<8x32xf32>
    %c56_263 = arith.constant 56 : index
    %c0_264 = arith.constant 0 : index
    %435 = vector.load %arg10[%c56_263, %c0_264] : memref<64x64xf32, #tpu.memory_space<vmem>>, vector<8x32xf32>
    tpu.vector_store %arg10[%c56_263, %c0_264], %434 {strides = array<i32>} : memref<64x64xf32, #tpu.memory_space<vmem>>, vector<8x32xf32>,
    %436 = vector.extract_strided_slice %433 {offsets = [0, 32], sizes = [8, 32], strides = [1, 1]} : vector<8x64xf32> to vector<8x32xf32>
    %c0_265 = arith.constant 0 : index
    %c32_266 = arith.constant 32 : index
    %437 = vector.load %arg10[%c0_265, %c32_266] : memref<64x64xf32, #tpu.memory_space<vmem>>, vector<8x32xf32>
    tpu.vector_store %arg10[%c0_265, %c32_266], %436 {strides = array<i32>} : memref<64x64xf32, #tpu.memory_space<vmem>>, vector<8x32xf32>,
    %c0_267 = arith.constant 0 : index
    %c0_268 = arith.constant 0 : index
    %438 = vector.load %arg10[%c0_267, %c0_268] : memref<64x64xf32, #tpu.memory_space<vmem>>, vector<64x64xf32>
    %c0_269 = arith.constant 0 : index
    %c0_270 = arith.constant 0 : index
    %439 = vector.load %arg6[%c0_269, %c0_270] : memref<64x128xf32, #tpu.memory_space<vmem>>, vector<64x128xf32>
    %cst_271 = arith.constant dense<0.000000e+00> : vector<64x128xf32>
    %440 = tpu.matmul %438, %439, %cst_271 {dimension_numbers = #tpu.dot_dimension_numbers<[1], [0], [0], [1], [0, 0, 1, 1], [], []>} : vector<64x64xf32>, vector<64x128xf32>, vector<64x128xf32> -> vector<64x128xf32>
    %c0_272 = arith.constant 0 : index
    %c0_273 = arith.constant 0 : index
    %441 = vector.load %arg7[%c0_272, %c0_273] : memref<1x128xf32, #tpu.memory_space<vmem>>, vector<1x128xf32>
    %442 = vector.broadcast %441 : vector<1x128xf32> to vector<64x128xf32>
    %443 = arith.addf %440, %442 : vector<64x128xf32>
    %c0_274 = arith.constant 0 : index
    %c0_275 = arith.constant 0 : index
    %444 = vector.load %arg8[%c0_274, %c0_275] : memref<64x128xf32, #tpu.memory_space<vmem>>, vector<64x128xf32>
    tpu.vector_store %arg8[%c0_274, %c0_275], %443 {strides = array<i32>} : memref<64x128xf32, #tpu.memory_space<vmem>>, vector<64x128xf32>,
    return
  }
}

</mosaic_0001>

<llo_original>
// kernel: bilstm_ner_forward.1
$region0: #{bilstm_ner_forward.1}
  #allocation0 [shape = 'u32[]', space=smem, size = 0x4, offset = 0x4, fixed_abs, tag = 'smem constant byte address 0x4 - core index']
  #allocation1 [shape = 'u32[72,128]{1,0:T(1,128)}', space=vmem, size = 0x9000, scoped, tag = 'internal scratch']
  #allocation2 [shape = 'f32[64,64]{1,0:T(8,128)}', space=vmem, size = 0x8000, scoped, tag = 'scratch operand']
  #allocation3 [shape = 'f32[64,64]{1,0:T(8,128)}', space=vmem, size = 0x8000, scoped, tag = 'scratch operand']
  %s0 = inlined_call_operand.vmem [shape: s32[64,1], index: 0, kind: input, shape index: {}]
  %s1 = inlined_call_operand.vmem [shape: f32[64,64], index: 1, kind: input, shape index: {}]
  %s2 = inlined_call_operand.vmem [shape: f32[128,64], index: 2, kind: input, shape index: {}]
  %s3 = inlined_call_operand.vmem [shape: f32[4,64,64], index: 3, kind: input, shape index: {}]
  %s4 = inlined_call_operand.hbm [shape: f32[4,64,64], index: 4, kind: input, shape index: {}]
  %s5 = inlined_call_operand.vmem [shape: f32[4,1,64], index: 5, kind: input, shape index: {}]
  %s6 = inlined_call_operand.vmem [shape: f32[64,128], index: 6, kind: input, shape index: {}]
  %s7 = inlined_call_operand.vmem [shape: f32[1,128], index: 7, kind: input, shape index: {}]
  %s8 = inlined_call_operand.vmem [shape: f32[64,128], index: 8, kind: output, shape index: {}]
  %s9 = sld [smem:[#allocation0]]
  $region46: #{bilstm_ner_forward.1} parent=0
    _
  %s11 = ssub.s32 1, %s9
  %s12 = scalar_select 0, %s11, %s9
  $region1: #{bilstm_ner_forward.1} parent=0
    #allocation4 [shape = 'u8[131072]{0}', space=vmem, size = 0x20000, scoped, tag = 'input window, operand 4, single buffered']
    #allocation5 [shape = 's32[1]{0}', space=sflag, size = 0x4, scoped, tag = 'scoped memory for bilstm_ner_forward.1']
    %13 = vsyncpa [#allocation5], 0
    // Predicated region
    $region2: #{bilstm_ner_forward.1} parent=1 // pred_check
      _
    $region3: #{bilstm_ner_forward.1} parent=1 // pred_check_branch
      %15 = sbr.rel (0) target = $region5
    $region4: #{bilstm_ner_forward.1} parent=1 // pred_region
      _
    $region5: #{bilstm_ner_forward.1} parent=1 // pred_fallthru
      _
    // Predicated region
    $region6: #{bilstm_ner_forward.1} parent=1 // pred_check
      _
    $region7: #{bilstm_ner_forward.1} parent=1 // pred_check_branch
      %17 = sbr.rel (0) target = $region9
    $region8: #{bilstm_ner_forward.1} parent=1 // pred_region
      _
    $region9: #{bilstm_ner_forward.1} parent=1 // pred_fallthru
      _
    // Predicated region
    $region10: #{bilstm_ner_forward.1} parent=1 // pred_check
      _
    $region11: #{bilstm_ner_forward.1} parent=1 // pred_check_branch
      %19 = sbr.rel (0) target = $region13
    $region12: #{bilstm_ner_forward.1} parent=1 // pred_region
      _
    $region13: #{bilstm_ner_forward.1} parent=1 // pred_fallthru
      _
    // Predicated region
    $region14: #{bilstm_ner_forward.1} parent=1 // pred_check
      _
    $region15: #{bilstm_ner_forward.1} parent=1 // pred_check_branch
      %21 = sbr.rel (0) target = $region17
    $region16: #{bilstm_ner_forward.1} parent=1 // pred_region
      _
    $region17: #{bilstm_ner_forward.1} parent=1 // pred_fallthru
      _
    // Predicated region
    $region18: #{bilstm_ner_forward.1} parent=1 // pred_check
      _
    $region19: #{bilstm_ner_forward.1} parent=1 // pred_check_branch
      %23 = sbr.rel (0) target = $region21
    $region20: #{bilstm_ner_forward.1} parent=1 // pred_region
      %25 = vsyncadd [#allocation5], 0
      %s26 = sshll.u32 %s4, 4
      %s27 = int_to_ptr.hbm [resolvable:$true] %s26
      %s28 = sshll.u32 [#allocation4], 4
      %s29 = int_to_ptr.vmem [resolvable:$true] %s28
      %34 = dma.hbm_to_vmem [thread:$0]  %s27, 4096, %s29, [#allocation5], 128, 128, 8
    $region21: #{bilstm_ner_forward.1} parent=1 // pred_fallthru
      _
    // Predicated region
    $region22: #{bilstm_ner_forward.1} parent=1 // pred_check
      _
    $region23: #{bilstm_ner_forward.1} parent=1 // pred_check_branch
      %36 = sbr.rel (0) target = $region25
    $region24: #{bilstm_ner_forward.1} parent=1 // pred_region
      _
    $region25: #{bilstm_ner_forward.1} parent=1 // pred_fallthru
      _
    // Predicated region
    $region26: #{bilstm_ner_forward.1} parent=1 // pred_check
      _
    $region27: #{bilstm_ner_forward.1} parent=1 // pred_check_branch
      %38 = sbr.rel (0) target = $region29
    $region28: #{bilstm_ner_forward.1} parent=1 // pred_region
      _
    $region29: #{bilstm_ner_forward.1} parent=1 // pred_fallthru
      _
    // Predicated region
    $region30: #{bilstm_ner_forward.1} parent=1 // pred_check
      _
    $region31: #{bilstm_ner_forward.1} parent=1 // pred_check_branch
      %40 = sbr.rel (0) target = $region33
    $region32: #{bilstm_ner_forward.1} parent=1 // pred_region
      _
    $region33: #{bilstm_ner_forward.1} parent=1 // pred_fallthru
      _
    // Predicated region
    $region34: #{bilstm_ner_forward.1} parent=1 // pred_check
      _
    $region35: #{bilstm_ner_forward.1} parent=1 // pred_check_branch
      %42 = sbr.rel (0) target = $region37
    $region36: #{bilstm_ner_forward.1} parent=1 // pred_region
      %44 = dma.done [#allocation5], 4096
    $region37: #{bilstm_ner_forward.1} parent=1 // pred_fallthru
      _
    %v45 = vlaneseq
    %v46 = vand.u32 %v45, 127
    %v47 = vld [vmem:[%s0] sm:$0xff]
    %v48 = vld [vmem:[%s0 + $0x8] sm:$0xff]
    %v49 = vld [vmem:[%s0 + $0x10] sm:$0xff]
    %v50 = vld [vmem:[%s0 + $0x18] sm:$0xff]
    %v51 = vld [vmem:[%s0 + $0x20] sm:$0xff]
    %v52 = vld [vmem:[%s0 + $0x28] sm:$0xff]
    %v53 = vld [vmem:[%s0 + $0x30] sm:$0xff]
    %v54 = vld [vmem:[%s0 + $0x38] sm:$0xff]
    %55 = vset.pattern.permute.xlu0 0
    %56 = vperm.xlu0 %55, %v47
    %v57 = vpop.permute.xlu0 %56
    %58 = vset.pattern.permute.xlu0 0
    %59 = vperm.xlu0 %58, %v48
    %v60 = vpop.permute.xlu0 %59
    %61 = vset.pattern.permute.xlu0 0
    %62 = vperm.xlu0 %61, %v49
    %v63 = vpop.permute.xlu0 %62
    %64 = vset.pattern.permute.xlu0 0
    %65 = vperm.xlu0 %64, %v50
    %v66 = vpop.permute.xlu0 %65
    %67 = vset.pattern.permute.xlu0 0
    %68 = vperm.xlu0 %67, %v51
    %v69 = vpop.permute.xlu0 %68
    %70 = vset.pattern.permute.xlu0 0
    %71 = vperm.xlu0 %70, %v52
    %v72 = vpop.permute.xlu0 %71
    %73 = vset.pattern.permute.xlu0 0
    %74 = vperm.xlu0 %73, %v53
    %v75 = vpop.permute.xlu0 %74
    %76 = vset.pattern.permute.xlu0 0
    %77 = vperm.xlu0 %76, %v54
    %v78 = vpop.permute.xlu0 %77
    %vm79 = vcmp.eq.s32.totalorder %v46, %v57
    %vm80 = vcmp.eq.s32.totalorder %v46, %v60
    %vm81 = vcmp.eq.s32.totalorder %v46, %v63
    %vm82 = vcmp.eq.s32.totalorder %v46, %v66
    %vm83 = vcmp.eq.s32.totalorder %v46, %v69
    %vm84 = vcmp.eq.s32.totalorder %v46, %v72
    %vm85 = vcmp.eq.s32.totalorder %v46, %v75
    %vm86 = vcmp.eq.s32.totalorder %v46, %v78
    %v87 = vsel %vm79, 1, 0
    %v88 = vsel %vm80, 1, 0
    %v89 = vsel %vm81, 1, 0
    %v90 = vsel %vm82, 1, 0
    %v91 = vsel %vm83, 1, 0
    %v92 = vsel %vm84, 1, 0
    %v93 = vsel %vm85, 1, 0
    %v94 = vsel %vm86, 1, 0
    %v95 = vcvt.s32.f32 %v87
    %v96 = vcvt.s32.f32 %v88
    %v97 = vcvt.s32.f32 %v89
    %v98 = vcvt.s32.f32 %v90
    %v99 = vcvt.s32.f32 %v91
    %v100 = vcvt.s32.f32 %v92
    %v101 = vcvt.s32.f32 %v93
    %v102 = vcvt.s32.f32 %v94
    %v103 = vld [vmem:[%s2] sm:$0xff]
    %v104 = vld [vmem:[%s2 + $0x8] sm:$0xff]
    %v105 = vld [vmem:[%s2 + $0x10] sm:$0xff]
    %v106 = vld [vmem:[%s2 + $0x18] sm:$0xff]
    %v107 = vld [vmem:[%s2 + $0x20] sm:$0xff]
    %v108 = vld [vmem:[%s2 + $0x28] sm:$0xff]
    %v109 = vld [vmem:[%s2 + $0x30] sm:$0xff]
    %v110 = vld [vmem:[%s2 + $0x38] sm:$0xff]
    %v111 = vld [vmem:[%s2 + $0x40] sm:$0xff]
    %v112 = vld [vmem:[%s2 + $0x48] sm:$0xff]
    %v113 = vld [vmem:[%s2 + $0x50] sm:$0xff]
    %v114 = vld [vmem:[%s2 + $0x58] sm:$0xff]
    %v115 = vld [vmem:[%s2 + $0x60] sm:$0xff]
    %v116 = vld [vmem:[%s2 + $0x68] sm:$0xff]
    %v117 = vld [vmem:[%s2 + $0x70] sm:$0xff]
    %v118 = vld [vmem:[%s2 + $0x78] sm:$0xff]
    %119 = vmatpush.msra.mxu0 %v118
    %120 = vmatpush.msra.mxu0 %v117
    %121 = vmatpush.msra.mxu0 %v116
    %122 = vmatpush.msra.mxu0 %v115
    %123 = vmatpush.msra.mxu0 %v114
    %124 = vmatpush.msra.mxu0 %v113
    %125 = vmatpush.msra.mxu0 %v112
    %126 = vmatpush.msra.mxu0 %v111
    %127 = vmatpush.msra.mxu0 %v110
    %128 = vmatpush.msra.mxu0 %v109
    %129 = vmatpush.msra.mxu0 %v108
    %130 = vmatpush.msra.mxu0 %v107
    %131 = vmatpush.msra.mxu0 %v106
    %132 = vmatpush.msra.mxu0 %v105
    %133 = vmatpush.msra.mxu0 %v104
    %134 = vmatpush.msra.mxu0 %v103
    %135 = vmatmul.f32.gmra.mxu0 %v95
    %v136 = vpop.f32.mrf.mxu0
    %v137 = vadd.f32 0.0, %v136
    %138 = vmatmul.f32.gmra.mxu0 %v96
    %v139 = vpop.f32.mrf.mxu0
    %v140 = vadd.f32 0.0, %v139
    %141 = vmatmul.f32.gmra.mxu0 %v97
    %v142 = vpop.f32.mrf.mxu0
    %v143 = vadd.f32 0.0, %v142
    %144 = vmatmul.f32.gmra.mxu0 %v98
    %v145 = vpop.f32.mrf.mxu0
    %v146 = vadd.f32 0.0, %v145
    %147 = vmatmul.f32.gmra.mxu0 %v99
    %v148 = vpop.f32.mrf.mxu0
    %v149 = vadd.f32 0.0, %v148
    %150 = vmatmul.f32.gmra.mxu0 %v100
    %v151 = vpop.f32.mrf.mxu0
    %v152 = vadd.f32 0.0, %v151
    %153 = vmatmul.f32.gmra.mxu0 %v101
    %v154 = vpop.f32.mrf.mxu0
    %v155 = vadd.f32 0.0, %v154
    %156 = vmatmul.f32.gmra.mxu0 %v102
    %v157 = vpop.f32.mrf.mxu0
    %v158 = vadd.f32 0.0, %v157
    %159 = vdwg.mxu0
    %vm160 = vcmp.lt.s32.totalorder %v46, 32
    %v161 = vld [vmem:[%s3] sm:$0xff]
    %v162 = vld [vmem:[%s3 + $0x8] sm:$0xff]
    %v163 = vld [vmem:[%s3 + $0x10] sm:$0xff]
    %v164 = vld [vmem:[%s3 + $0x18] sm:$0xff]
    %v165 = vld [vmem:[%s3 + $0x20] sm:$0xff]
    %v166 = vld [vmem:[%s3 + $0x28] sm:$0xff]
    %v167 = vld [vmem:[%s3 + $0x30] sm:$0xff]
    %v168 = vld [vmem:[%s3 + $0x38] sm:$0xff]
    %v169 = vld [vmem:[%s5] sm:$0x1]
    %v171 = vperm.slane %v169, 0
    %vm173 = vcmask 523264
    %v175 = vsel %vm173, %v137, 0
    %v178 = vsel %vm173, %v140, 0
    %v181 = vsel %vm173, %v143, 0
    %v184 = vsel %vm173, %v146, 0
    %v187 = vsel %vm173, %v149, 0
    %v190 = vsel %vm173, %v152, 0
    %v193 = vsel %vm173, %v155, 0
    %v196 = vsel %vm173, %v158, 0
    %198 = vmatpush.msra.mxu0 0.0
    %199 = vmatpush.msra.mxu0 0.0
    %200 = vmatpush.msra.mxu0 0.0
    %201 = vmatpush.msra.mxu0 0.0
    %202 = vmatpush.msra.mxu0 0.0
    %203 = vmatpush.msra.mxu0 0.0
    %204 = vmatpush.msra.mxu0 0.0
    %205 = vmatpush.msra.mxu0 0.0
    %206 = vmatpush.msra.mxu0 %v168
    %207 = vmatpush.msra.mxu0 %v167
    %208 = vmatpush.msra.mxu0 %v166
    %209 = vmatpush.msra.mxu0 %v165
    %210 = vmatpush.msra.mxu0 %v164
    %211 = vmatpush.msra.mxu0 %v163
    %212 = vmatpush.msra.mxu0 %v162
    %213 = vmatpush.msra.mxu0 %v161
    %214 = vmatmul.f32.gmra.mxu0 %v175
    %v215 = vpop.f32.mrf.mxu0
    %v216 = vadd.f32 %v171, %v215
    %217 = vmatmul.f32.gmra.mxu0 %v178
    %v218 = vpop.f32.mrf.mxu0
    %v219 = vadd.f32 %v171, %v218
    %220 = vmatmul.f32.gmra.mxu0 %v181
    %v221 = vpop.f32.mrf.mxu0
    %v222 = vadd.f32 %v171, %v221
    %223 = vmatmul.f32.gmra.mxu0 %v184
    %v224 = vpop.f32.mrf.mxu0
    %v225 = vadd.f32 %v171, %v224
    %226 = vmatmul.f32.gmra.mxu0 %v187
    %v227 = vpop.f32.mrf.mxu0
    %v228 = vadd.f32 %v171, %v227
    %229 = vmatmul.f32.gmra.mxu0 %v190
    %v230 = vpop.f32.mrf.mxu0
    %v231 = vadd.f32 %v171, %v230
    %232 = vmatmul.f32.gmra.mxu0 %v193
    %v233 = vpop.f32.mrf.mxu0
    %v234 = vadd.f32 %v171, %v233
    %235 = vmatmul.f32.gmra.mxu0 %v196
    %v236 = vpop.f32.mrf.mxu0
    %v237 = vadd.f32 %v171, %v236
    %238 = vdwg.mxu0
    %v239 = vld [vmem:[#allocation4] sm:$0xff]
    %v240 = vld [vmem:[#allocation4 + $0x8] sm:$0xff]
    %v241 = vld [vmem:[#allocation4 + $0x10] sm:$0xff]
    %v242 = vld [vmem:[#allocation4 + $0x18] sm:$0xff]
    %v243 = vld [vmem:[#allocation4 + $0x20] sm:$0xff]
    %v244 = vld [vmem:[#allocation4 + $0x28] sm:$0xff]
    %v245 = vld [vmem:[#allocation4 + $0x30] sm:$0xff]
    %v246 = vld [vmem:[#allocation4 + $0x38] sm:$0xff]
    %v247 = vsel %vm160, %v216, %v237
    %v249 = vsel %vm173, 0.0, 0
    %251 = vmatpush.msra.mxu0 0.0
    %252 = vmatpush.msra.mxu0 0.0
    %253 = vmatpush.msra.mxu0 0.0
    %254 = vmatpush.msra.mxu0 0.0
    %255 = vmatpush.msra.mxu0 0.0
    %256 = vmatpush.msra.mxu0 0.0
    %257 = vmatpush.msra.mxu0 0.0
    %258 = vmatpush.msra.mxu0 0.0
    %259 = vmatpush.msra.mxu0 %v246
    %260 = vmatpush.msra.mxu0 %v245
    %261 = vmatpush.msra.mxu0 %v244
    %262 = vmatpush.msra.mxu0 %v243
    %263 = vmatpush.msra.mxu0 %v242
    %264 = vmatpush.msra.mxu0 %v241
    %265 = vmatpush.msra.mxu0 %v240
    %266 = vmatpush.msra.mxu0 %v239
    %267 = vmatmul.f32.gmra.mxu0 %v249
    %v268 = vpop.f32.mrf.mxu0
    %v269 = vadd.f32 0.0, %v268
    %270 = vdwg.mxu0
    %v271 = vadd.f32 %v247, %v269
    %v272 = vtanh.pop %v271
    %v273 = vld [vmem:[%s1] sm:$0xff]
    %v274 = vmul.f32 %v272, %v273
    %vm275 = vcmask 261120
    %276 = vst.msk [vmem:[#allocation2] sm:$0xff] %vm275, %v274
    %vm277 = vcmask 523520
    %278 = vst.msk [vmem:[#allocation2 + $0x38] sm:$0xff] %vm277, %v274
    %v279 = vsel %vm160, %v219, %v234
    %v281 = vsel %vm173, %v274, 0
    %283 = vmatpush.msra.mxu0 0.0
    %284 = vmatpush.msra.mxu0 0.0
    %285 = vmatpush.msra.mxu0 0.0
    %286 = vmatpush.msra.mxu0 0.0
    %287 = vmatpush.msra.mxu0 0.0
    %288 = vmatpush.msra.mxu0 0.0
    %289 = vmatpush.msra.mxu0 0.0
    %290 = vmatpush.msra.mxu0 0.0
    %291 = vmatpush.msra.mxu0 %v246
    %292 = vmatpush.msra.mxu0 %v245
    %293 = vmatpush.msra.mxu0 %v244
    %294 = vmatpush.msra.mxu0 %v243
    %295 = vmatpush.msra.mxu0 %v242
    %296 = vmatpush.msra.mxu0 %v241
    %297 = vmatpush.msra.mxu0 %v240
    %298 = vmatpush.msra.mxu0 %v239
    %299 = vmatmul.f32.gmra.mxu0 %v281
    %v300 = vpop.f32.mrf.mxu0
    %v301 = vadd.f32 0.0, %v300
    %302 = vdwg.mxu0
    %v303 = vadd.f32 %v279, %v301
    %v304 = vtanh.pop %v303
    %v305 = vld [vmem:[%s1 + $0x8] sm:$0xff]
    %v306 = vmul.f32 %v304, %v305
    %307 = vst.msk [vmem:[#allocation2 + $0x8] sm:$0xff] %vm275, %v306
    %308 = vst.msk [vmem:[#allocation2 + $0x30] sm:$0xff] %vm277, %v306
    %v309 = vsel %vm160, %v222, %v231
    %v311 = vsel %vm173, %v306, 0
    %313 = vmatpush.msra.mxu0 0.0
    %314 = vmatpush.msra.mxu0 0.0
    %315 = vmatpush.msra.mxu0 0.0
    %316 = vmatpush.msra.mxu0 0.0
    %317 = vmatpush.msra.mxu0 0.0
    %318 = vmatpush.msra.mxu0 0.0
    %319 = vmatpush.msra.mxu0 0.0
    %320 = vmatpush.msra.mxu0 0.0
    %321 = vmatpush.msra.mxu0 %v246
    %322 = vmatpush.msra.mxu0 %v245
    %323 = vmatpush.msra.mxu0 %v244
    %324 = vmatpush.msra.mxu0 %v243
    %325 = vmatpush.msra.mxu0 %v242
    %326 = vmatpush.msra.mxu0 %v241
    %327 = vmatpush.msra.mxu0 %v240
    %328 = vmatpush.msra.mxu0 %v239
    %329 = vmatmul.f32.gmra.mxu0 %v311
    %v330 = vpop.f32.mrf.mxu0
    %v331 = vadd.f32 0.0, %v330
    %332 = vdwg.mxu0
    %v333 = vadd.f32 %v309, %v331
    %v334 = vtanh.pop %v333
    %v335 = vld [vmem:[%s1 + $0x10] sm:$0xff]
    %v336 = vmul.f32 %v334, %v335
    %337 = vst.msk [vmem:[#allocation2 + $0x10] sm:$0xff] %vm275, %v336
    %338 = vst.msk [vmem:[#allocation2 + $0x28] sm:$0xff] %vm277, %v336
    %v339 = vsel %vm160, %v225, %v228
    %v341 = vsel %vm173, %v336, 0
    %343 = vmatpush.msra.mxu0 0.0
    %344 = vmatpush.msra.mxu0 0.0
    %345 = vmatpush.msra.mxu0 0.0
    %346 = vmatpush.msra.mxu0 0.0
    %347 = vmatpush.msra.mxu0 0.0
    %348 = vmatpush.msra.mxu0 0.0
    %349 = vmatpush.msra.mxu0 0.0
    %350 = vmatpush.msra.mxu0 0.0
    %351 = vmatpush.msra.mxu0 %v246
    %352 = vmatpush.msra.mxu0 %v245
    %353 = vmatpush.msra.mxu0 %v244
    %354 = vmatpush.msra.mxu0 %v243
    %355 = vmatpush.msra.mxu0 %v242
    %356 = vmatpush.msra.mxu0 %v241
    %357 = vmatpush.msra.mxu0 %v240
    %358 = vmatpush.msra.mxu0 %v239
    %359 = vmatmul.f32.gmra.mxu0 %v341
    %v360 = vpop.f32.mrf.mxu0
    %v361 = vadd.f32 0.0, %v360
    %362 = vdwg.mxu0
    %v363 = vadd.f32 %v339, %v361
    %v364 = vtanh.pop %v363
    %v365 = vld [vmem:[%s1 + $0x18] sm:$0xff]
    %v366 = vmul.f32 %v364, %v365
    %367 = vst.msk [vmem:[#allocation2 + $0x18] sm:$0xff] %vm275, %v366
    %368 = vst.msk [vmem:[#allocation2 + $0x20] sm:$0xff] %vm277, %v366
    %v369 = vsel %vm160, %v228, %v225
    %v371 = vsel %vm173, %v366, 0
    %373 = vmatpush.msra.mxu0 0.0
    %374 = vmatpush.msra.mxu0 0.0
    %375 = vmatpush.msra.mxu0 0.0
    %376 = vmatpush.msra.mxu0 0.0
    %377 = vmatpush.msra.mxu0 0.0
    %378 = vmatpush.msra.mxu0 0.0
    %379 = vmatpush.msra.mxu0 0.0
    %380 = vmatpush.msra.mxu0 0.0
    %381 = vmatpush.msra.mxu0 %v246
    %382 = vmatpush.msra.mxu0 %v245
    %383 = vmatpush.msra.mxu0 %v244
    %384 = vmatpush.msra.mxu0 %v243
    %385 = vmatpush.msra.mxu0 %v242
    %386 = vmatpush.msra.mxu0 %v241
    %387 = vmatpush.msra.mxu0 %v240
    %388 = vmatpush.msra.mxu0 %v239
    %389 = vmatmul.f32.gmra.mxu0 %v371
    %v390 = vpop.f32.mrf.mxu0
    %v391 = vadd.f32 0.0, %v390
    %392 = vdwg.mxu0
    %v393 = vadd.f32 %v369, %v391
    %v394 = vtanh.pop %v393
    %v395 = vld [vmem:[%s1 + $0x20] sm:$0xff]
    %v396 = vmul.f32 %v394, %v395
    %397 = vst.msk [vmem:[#allocation2 + $0x20] sm:$0xff] %vm275, %v396
    %398 = vst.msk [vmem:[#allocation2 + $0x18] sm:$0xff] %vm277, %v396
    %v399 = vsel %vm160, %v231, %v222
    %v401 = vsel %vm173, %v396, 0
    %403 = vmatpush.msra.mxu0 0.0
    %404 = vmatpush.msra.mxu0 0.0
    %405 = vmatpush.msra.mxu0 0.0
    %406 = vmatpush.msra.mxu0 0.0
    %407 = vmatpush.msra.mxu0 0.0
    %408 = vmatpush.msra.mxu0 0.0
    %409 = vmatpush.msra.mxu0 0.0
    %410 = vmatpush.msra.mxu0 0.0
    %411 = vmatpush.msra.mxu0 %v246
    %412 = vmatpush.msra.mxu0 %v245
    %413 = vmatpush.msra.mxu0 %v244
    %414 = vmatpush.msra.mxu0 %v243
    %415 = vmatpush.msra.mxu0 %v242
    %416 = vmatpush.msra.mxu0 %v241
    %417 = vmatpush.msra.mxu0 %v240
    %418 = vmatpush.msra.mxu0 %v239
    %419 = vmatmul.f32.gmra.mxu0 %v401
    %v420 = vpop.f32.mrf.mxu0
    %v421 = vadd.f32 0.0, %v420
    %422 = vdwg.mxu0
    %v423 = vadd.f32 %v399, %v421
    %v424 = vtanh.pop %v423
    %v425 = vld [vmem:[%s1 + $0x28] sm:$0xff]
    %v426 = vmul.f32 %v424, %v425
    %427 = vst.msk [vmem:[#allocation2 + $0x28] sm:$0xff] %vm275, %v426
    %428 = vst.msk [vmem:[#allocation2 + $0x10] sm:$0xff] %vm277, %v426
    %v429 = vsel %vm160, %v234, %v219
    %v431 = vsel %vm173, %v426, 0
    %433 = vmatpush.msra.mxu0 0.0
    %434 = vmatpush.msra.mxu0 0.0
    %435 = vmatpush.msra.mxu0 0.0
    %436 = vmatpush.msra.mxu0 0.0
    %437 = vmatpush.msra.mxu0 0.0
    %438 = vmatpush.msra.mxu0 0.0
    %439 = vmatpush.msra.mxu0 0.0
    %440 = vmatpush.msra.mxu0 0.0
    %441 = vmatpush.msra.mxu0 %v246
    %442 = vmatpush.msra.mxu0 %v245
    %443 = vmatpush.msra.mxu0 %v244
    %444 = vmatpush.msra.mxu0 %v243
    %445 = vmatpush.msra.mxu0 %v242
    %446 = vmatpush.msra.mxu0 %v241
    %447 = vmatpush.msra.mxu0 %v240
    %448 = vmatpush.msra.mxu0 %v239
    %449 = vmatmul.f32.gmra.mxu0 %v431
    %v450 = vpop.f32.mrf.mxu0
    %v451 = vadd.f32 0.0, %v450
    %452 = vdwg.mxu0
    %v453 = vadd.f32 %v429, %v451
    %v454 = vtanh.pop %v453
    %v455 = vld [vmem:[%s1 + $0x30] sm:$0xff]
    %v456 = vmul.f32 %v454, %v455
    %457 = vst.msk [vmem:[#allocation2 + $0x30] sm:$0xff] %vm275, %v456
    %458 = vst.msk [vmem:[#allocation2 + $0x8] sm:$0xff] %vm277, %v456
    %v459 = vsel %vm160, %v237, %v216
    %v461 = vsel %vm173, %v456, 0
    %463 = vmatpush.msra.mxu0 0.0
    %464 = vmatpush.msra.mxu0 0.0
    %465 = vmatpush.msra.mxu0 0.0
    %466 = vmatpush.msra.mxu0 0.0
    %467 = vmatpush.msra.mxu0 0.0
    %468 = vmatpush.msra.mxu0 0.0
    %469 = vmatpush.msra.mxu0 0.0
    %470 = vmatpush.msra.mxu0 0.0
    %471 = vmatpush.msra.mxu0 %v246
    %472 = vmatpush.msra.mxu0 %v245
    %473 = vmatpush.msra.mxu0 %v244
    %474 = vmatpush.msra.mxu0 %v243
    %475 = vmatpush.msra.mxu0 %v242
    %476 = vmatpush.msra.mxu0 %v241
    %477 = vmatpush.msra.mxu0 %v240
    %478 = vmatpush.msra.mxu0 %v239
    %479 = vmatmul.f32.gmra.mxu0 %v461
    %v480 = vpop.f32.mrf.mxu0
    %v481 = vadd.f32 0.0, %v480
    %482 = vdwg.mxu0
    %v483 = vadd.f32 %v459, %v481
    %v484 = vtanh.pop %v483
    %v485 = vld [vmem:[%s1 + $0x38] sm:$0xff]
    %v486 = vmul.f32 %v484, %v485
    %487 = vst.msk [vmem:[#allocation2 + $0x38] sm:$0xff] %vm275, %v486
    %488 = vst.msk [vmem:[#allocation2] sm:$0xff] %vm277, %v486
    %v489 = vld [vmem:[#allocation2] sm:$0xff]
    %v490 = vld [vmem:[#allocation2 + $0x8] sm:$0xff]
    %v491 = vld [vmem:[#allocation2 + $0x10] sm:$0xff]
    %v492 = vld [vmem:[#allocation2 + $0x18] sm:$0xff]
    %v493 = vld [vmem:[#allocation2 + $0x20] sm:$0xff]
    %v494 = vld [vmem:[#allocation2 + $0x28] sm:$0xff]
    %v495 = vld [vmem:[#allocation2 + $0x30] sm:$0xff]
    %v496 = vld [vmem:[#allocation2 + $0x38] sm:$0xff]
    %s497 = scalar_lea.vmem %s3, 64
    %v498 = vld [vmem:[%s497] sm:$0xff]
    %v499 = vld [vmem:[%s497 + $0x8] sm:$0xff]
    %v500 = vld [vmem:[%s497 + $0x10] sm:$0xff]
    %v501 = vld [vmem:[%s497 + $0x18] sm:$0xff]
    %v502 = vld [vmem:[%s497 + $0x20] sm:$0xff]
    %v503 = vld [vmem:[%s497 + $0x28] sm:$0xff]
    %v504 = vld [vmem:[%s497 + $0x30] sm:$0xff]
    %v505 = vld [vmem:[%s497 + $0x38] sm:$0xff]
    %s506 = scalar_lea.vmem %s5, 1
    %v507 = vld [vmem:[%s506] sm:$0x1]
    %v509 = vperm.slane %v507, 0
    %v512 = vsel %vm173, %v489, 0
    %v515 = vsel %vm173, %v490, 0
    %v518 = vsel %vm173, %v491, 0
    %v521 = vsel %vm173, %v492, 0
    %v524 = vsel %vm173, %v493, 0
    %v527 = vsel %vm173, %v494, 0
    %v530 = vsel %vm173, %v495, 0
    %v533 = vsel %vm173, %v496, 0
    %535 = vmatpush.msra.mxu0 0.0
    %536 = vmatpush.msra.mxu0 0.0
    %537 = vmatpush.msra.mxu0 0.0
    %538 = vmatpush.msra.mxu0 0.0
    %539 = vmatpush.msra.mxu0 0.0
    %540 = vmatpush.msra.mxu0 0.0
    %541 = vmatpush.msra.mxu0 0.0
    %542 = vmatpush.msra.mxu0 0.0
    %543 = vmatpush.msra.mxu0 %v505
    %544 = vmatpush.msra.mxu0 %v504
    %545 = vmatpush.msra.mxu0 %v503
    %546 = vmatpush.msra.mxu0 %v502
    %547 = vmatpush.msra.mxu0 %v501
    %548 = vmatpush.msra.mxu0 %v500
    %549 = vmatpush.msra.mxu0 %v499
    %550 = vmatpush.msra.mxu0 %v498
    %551 = vmatmul.f32.gmra.mxu0 %v512
    %v552 = vpop.f32.mrf.mxu0
    %v553 = vadd.f32 %v509, %v552
    %554 = vmatmul.f32.gmra.mxu0 %v515
    %v555 = vpop.f32.mrf.mxu0
    %v556 = vadd.f32 %v509, %v555
    %557 = vmatmul.f32.gmra.mxu0 %v518
    %v558 = vpop.f32.mrf.mxu0
    %v559 = vadd.f32 %v509, %v558
    %560 = vmatmul.f32.gmra.mxu0 %v521
    %v561 = vpop.f32.mrf.mxu0
    %v562 = vadd.f32 %v509, %v561
    %563 = vmatmul.f32.gmra.mxu0 %v524
    %v564 = vpop.f32.mrf.mxu0
    %v565 = vadd.f32 %v509, %v564
    %566 = vmatmul.f32.gmra.mxu0 %v527
    %v567 = vpop.f32.mrf.mxu0
    %v568 = vadd.f32 %v509, %v567
    %569 = vmatmul.f32.gmra.mxu0 %v530
    %v570 = vpop.f32.mrf.mxu0
    %v571 = vadd.f32 %v509, %v570
    %572 = vmatmul.f32.gmra.mxu0 %v533
    %v573 = vpop.f32.mrf.mxu0
    %v574 = vadd.f32 %v509, %v573
    %575 = vdwg.mxu0
    %s576 = scalar_lea.vmem [#allocation4], 64
    %v577 = vld [vmem:[%s576] sm:$0xff]
    %v578 = vld [vmem:[%s576 + $0x8] sm:$0xff]
    %v579 = vld [vmem:[%s576 + $0x10] sm:$0xff]
    %v580 = vld [vmem:[%s576 + $0x18] sm:$0xff]
    %v581 = vld [vmem:[%s576 + $0x20] sm:$0xff]
    %v582 = vld [vmem:[%s576 + $0x28] sm:$0xff]
    %v583 = vld [vmem:[%s576 + $0x30] sm:$0xff]
    %v584 = vld [vmem:[%s576 + $0x38] sm:$0xff]
    %v585 = vsel %vm160, %v553, %v574
    %586 = vmatpush.msra.mxu0 0.0
    %587 = vmatpush.msra.mxu0 0.0
    %588 = vmatpush.msra.mxu0 0.0
    %589 = vmatpush.msra.mxu0 0.0
    %590 = vmatpush.msra.mxu0 0.0
    %591 = vmatpush.msra.mxu0 0.0
    %592 = vmatpush.msra.mxu0 0.0
    %593 = vmatpush.msra.mxu0 0.0
    %594 = vmatpush.msra.mxu0 %v584
    %595 = vmatpush.msra.mxu0 %v583
    %596 = vmatpush.msra.mxu0 %v582
    %597 = vmatpush.msra.mxu0 %v581
    %598 = vmatpush.msra.mxu0 %v580
    %599 = vmatpush.msra.mxu0 %v579
    %600 = vmatpush.msra.mxu0 %v578
    %601 = vmatpush.msra.mxu0 %v577
    %602 = vmatmul.f32.gmra.mxu0 %v249
    %v603 = vpop.f32.mrf.mxu0
    %v604 = vadd.f32 0.0, %v603
    %605 = vdwg.mxu0
    %v606 = vadd.f32 %v585, %v604
    %v607 = vtanh.pop %v606
    %v608 = vld [vmem:[%s1] sm:$0xff]
    %v609 = vmul.f32 %v607, %v608
    %610 = vst.msk [vmem:[#allocation3] sm:$0xff] %vm275, %v609
    %611 = vst.msk [vmem:[#allocation3 + $0x38] sm:$0xff] %vm277, %v609
    %v612 = vsel %vm160, %v556, %v571
    %v614 = vsel %vm173, %v609, 0
    %616 = vmatpush.msra.mxu0 0.0
    %617 = vmatpush.msra.mxu0 0.0
    %618 = vmatpush.msra.mxu0 0.0
    %619 = vmatpush.msra.mxu0 0.0
    %620 = vmatpush.msra.mxu0 0.0
    %621 = vmatpush.msra.mxu0 0.0
    %622 = vmatpush.msra.mxu0 0.0
    %623 = vmatpush.msra.mxu0 0.0
    %624 = vmatpush.msra.mxu0 %v584
    %625 = vmatpush.msra.mxu0 %v583
    %626 = vmatpush.msra.mxu0 %v582
    %627 = vmatpush.msra.mxu0 %v581
    %628 = vmatpush.msra.mxu0 %v580
    %629 = vmatpush.msra.mxu0 %v579
    %630 = vmatpush.msra.mxu0 %v578
    %631 = vmatpush.msra.mxu0 %v577
    %632 = vmatmul.f32.gmra.mxu0 %v614
    %v633 = vpop.f32.mrf.mxu0
    %v634 = vadd.f32 0.0, %v633
    %635 = vdwg.mxu0
    %v636 = vadd.f32 %v612, %v634
    %v637 = vtanh.pop %v636
    %v638 = vld [vmem:[%s1 + $0x8] sm:$0xff]
    %v639 = vmul.f32 %v637, %v638
    %640 = vst.msk [vmem:[#allocation3 + $0x8] sm:$0xff] %vm275, %v639
    %641 = vst.msk [vmem:[#allocation3 + $0x30] sm:$0xff] %vm277, %v639
    %v642 = vsel %vm160, %v559, %v568
    %v644 = vsel %vm173, %v639, 0
    %646 = vmatpush.msra.mxu0 0.0
    %647 = vmatpush.msra.mxu0 0.0
    %648 = vmatpush.msra.mxu0 0.0
    %649 = vmatpush.msra.mxu0 0.0
    %650 = vmatpush.msra.mxu0 0.0
    %651 = vmatpush.msra.mxu0 0.0
    %652 = vmatpush.msra.mxu0 0.0
    %653 = vmatpush.msra.mxu0 0.0
    %654 = vmatpush.msra.mxu0 %v584
    %655 = vmatpush.msra.mxu0 %v583
    %656 = vmatpush.msra.mxu0 %v582
    %657 = vmatpush.msra.mxu0 %v581
    %658 = vmatpush.msra.mxu0 %v580
    %659 = vmatpush.msra.mxu0 %v579
    %660 = vmatpush.msra.mxu0 %v578
    %661 = vmatpush.msra.mxu0 %v577
    %662 = vmatmul.f32.gmra.mxu0 %v644
    %v663 = vpop.f32.mrf.mxu0
    %v664 = vadd.f32 0.0, %v663
    %665 = vdwg.mxu0
    %v666 = vadd.f32 %v642, %v664
    %v667 = vtanh.pop %v666
    %v668 = vld [vmem:[%s1 + $0x10] sm:$0xff]
    %v669 = vmul.f32 %v667, %v668
    %670 = vst.msk [vmem:[#allocation3 + $0x10] sm:$0xff] %vm275, %v669
    %671 = vst.msk [vmem:[#allocation3 + $0x28] sm:$0xff] %vm277, %v669
    %v672 = vsel %vm160, %v562, %v565
    %v674 = vsel %vm173, %v669, 0
    %676 = vmatpush.msra.mxu0 0.0
    %677 = vmatpush.msra.mxu0 0.0
    %678 = vmatpush.msra.mxu0 0.0
    %679 = vmatpush.msra.mxu0 0.0
    %680 = vmatpush.msra.mxu0 0.0
    %681 = vmatpush.msra.mxu0 0.0
    %682 = vmatpush.msra.mxu0 0.0
    %683 = vmatpush.msra.mxu0 0.0
    %684 = vmatpush.msra.mxu0 %v584
    %685 = vmatpush.msra.mxu0 %v583
    %686 = vmatpush.msra.mxu0 %v582
    %687 = vmatpush.msra.mxu0 %v581
    %688 = vmatpush.msra.mxu0 %v580
    %689 = vmatpush.msra.mxu0 %v579
    %690 = vmatpush.msra.mxu0 %v578
    %691 = vmatpush.msra.mxu0 %v577
    %692 = vmatmul.f32.gmra.mxu0 %v674
    %v693 = vpop.f32.mrf.mxu0
    %v694 = vadd.f32 0.0, %v693
    %695 = vdwg.mxu0
    %v696 = vadd.f32 %v672, %v694
    %v697 = vtanh.pop %v696
    %v698 = vld [vmem:[%s1 + $0x18] sm:$0xff]
    %v699 = vmul.f32 %v697, %v698
    %700 = vst.msk [vmem:[#allocation3 + $0x18] sm:$0xff] %vm275, %v699
    %701 = vst.msk [vmem:[#allocation3 + $0x20] sm:$0xff] %vm277, %v699
    %v702 = vsel %vm160, %v565, %v562
    %v704 = vsel %vm173, %v699, 0
    %706 = vmatpush.msra.mxu0 0.0
    %707 = vmatpush.msra.mxu0 0.0
    %708 = vmatpush.msra.mxu0 0.0
    %709 = vmatpush.msra.mxu0 0.0
    %710 = vmatpush.msra.mxu0 0.0
    %711 = vmatpush.msra.mxu0 0.0
    %712 = vmatpush.msra.mxu0 0.0
    %713 = vmatpush.msra.mxu0 0.0
    %714 = vmatpush.msra.mxu0 %v584
    %715 = vmatpush.msra.mxu0 %v583
    %716 = vmatpush.msra.mxu0 %v582
    %717 = vmatpush.msra.mxu0 %v581
    %718 = vmatpush.msra.mxu0 %v580
    %719 = vmatpush.msra.mxu0 %v579
    %720 = vmatpush.msra.mxu0 %v578
    %721 = vmatpush.msra.mxu0 %v577
    %722 = vmatmul.f32.gmra.mxu0 %v704
    %v723 = vpop.f32.mrf.mxu0
    %v724 = vadd.f32 0.0, %v723
    %725 = vdwg.mxu0
    %v726 = vadd.f32 %v702, %v724
    %v727 = vtanh.pop %v726
    %v728 = vld [vmem:[%s1 + $0x20] sm:$0xff]
    %v729 = vmul.f32 %v727, %v728
    %730 = vst.msk [vmem:[#allocation3 + $0x20] sm:$0xff] %vm275, %v729
    %731 = vst.msk [vmem:[#allocation3 + $0x18] sm:$0xff] %vm277, %v729
    %v732 = vsel %vm160, %v568, %v559
    %v734 = vsel %vm173, %v729, 0
    %736 = vmatpush.msra.mxu0 0.0
    %737 = vmatpush.msra.mxu0 0.0
    %738 = vmatpush.msra.mxu0 0.0
    %739 = vmatpush.msra.mxu0 0.0
    %740 = vmatpush.msra.mxu0 0.0
    %741 = vmatpush.msra.mxu0 0.0
    %742 = vmatpush.msra.mxu0 0.0
    %743 = vmatpush.msra.mxu0 0.0
    %744 = vmatpush.msra.mxu0 %v584
    %745 = vmatpush.msra.mxu0 %v583
    %746 = vmatpush.msra.mxu0 %v582
    %747 = vmatpush.msra.mxu0 %v581
    %748 = vmatpush.msra.mxu0 %v580
    %749 = vmatpush.msra.mxu0 %v579
    %750 = vmatpush.msra.mxu0 %v578
    %751 = vmatpush.msra.mxu0 %v577
    %752 = vmatmul.f32.gmra.mxu0 %v734
    %v753 = vpop.f32.mrf.mxu0
    %v754 = vadd.f32 0.0, %v753
    %755 = vdwg.mxu0
    %v756 = vadd.f32 %v732, %v754
    %v757 = vtanh.pop %v756
    %v758 = vld [vmem:[%s1 + $0x28] sm:$0xff]
    %v759 = vmul.f32 %v757, %v758
    %760 = vst.msk [vmem:[#allocation3 + $0x28] sm:$0xff] %vm275, %v759
    %761 = vst.msk [vmem:[#allocation3 + $0x10] sm:$0xff] %vm277, %v759
    %v762 = vsel %vm160, %v571, %v556
    %v764 = vsel %vm173, %v759, 0
    %766 = vmatpush.msra.mxu0 0.0
    %767 = vmatpush.msra.mxu0 0.0
    %768 = vmatpush.msra.mxu0 0.0
    %769 = vmatpush.msra.mxu0 0.0
    %770 = vmatpush.msra.mxu0 0.0
    %771 = vmatpush.msra.mxu0 0.0
    %772 = vmatpush.msra.mxu0 0.0
    %773 = vmatpush.msra.mxu0 0.0
    %774 = vmatpush.msra.mxu0 %v584
    %775 = vmatpush.msra.mxu0 %v583
    %776 = vmatpush.msra.mxu0 %v582
    %777 = vmatpush.msra.mxu0 %v581
    %778 = vmatpush.msra.mxu0 %v580
    %779 = vmatpush.msra.mxu0 %v579
    %780 = vmatpush.msra.mxu0 %v578
    %781 = vmatpush.msra.mxu0 %v577
    %782 = vmatmul.f32.gmra.mxu0 %v764
    %v783 = vpop.f32.mrf.mxu0
    %v784 = vadd.f32 0.0, %v783
    %785 = vdwg.mxu0
    %v786 = vadd.f32 %v762, %v784
    %v787 = vtanh.pop %v786
    %v788 = vld [vmem:[%s1 + $0x30] sm:$0xff]
    %v789 = vmul.f32 %v787, %v788
    %790 = vst.msk [vmem:[#allocation3 + $0x30] sm:$0xff] %vm275, %v789
    %791 = vst.msk [vmem:[#allocation3 + $0x8] sm:$0xff] %vm277, %v789
    %v792 = vsel %vm160, %v574, %v553
    %v794 = vsel %vm173, %v789, 0
    %796 = vmatpush.msra.mxu0 0.0
    %797 = vmatpush.msra.mxu0 0.0
    %798 = vmatpush.msra.mxu0 0.0
    %799 = vmatpush.msra.mxu0 0.0
    %800 = vmatpush.msra.mxu0 0.0
    %801 = vmatpush.msra.mxu0 0.0
    %802 = vmatpush.msra.mxu0 0.0
    %803 = vmatpush.msra.mxu0 0.0
    %804 = vmatpush.msra.mxu0 %v584
    %805 = vmatpush.msra.mxu0 %v583
    %806 = vmatpush.msra.mxu0 %v582
    %807 = vmatpush.msra.mxu0 %v581
    %808 = vmatpush.msra.mxu0 %v580
    %809 = vmatpush.msra.mxu0 %v579
    %810 = vmatpush.msra.mxu0 %v578
    %811 = vmatpush.msra.mxu0 %v577
    %812 = vmatmul.f32.gmra.mxu0 %v794
    %v813 = vpop.f32.mrf.mxu0
    %v814 = vadd.f32 0.0, %v813
    %815 = vdwg.mxu0
    %v816 = vadd.f32 %v792, %v814
    %v817 = vtanh.pop %v816
    %v818 = vld [vmem:[%s1 + $0x38] sm:$0xff]
    %v819 = vmul.f32 %v817, %v818
    %820 = vst.msk [vmem:[#allocation3 + $0x38] sm:$0xff] %vm275, %v819
    %821 = vst.msk [vmem:[#allocation3] sm:$0xff] %vm277, %v819
    %v822 = vld [vmem:[#allocation3] sm:$0xff]
    %v823 = vld [vmem:[#allocation3 + $0x8] sm:$0xff]
    %v824 = vld [vmem:[#allocation3 + $0x10] sm:$0xff]
    %v825 = vld [vmem:[#allocation3 + $0x18] sm:$0xff]
    %v826 = vld [vmem:[#allocation3 + $0x20] sm:$0xff]
    %v827 = vld [vmem:[#allocation3 + $0x28] sm:$0xff]
    %v828 = vld [vmem:[#allocation3 + $0x30] sm:$0xff]
    %v829 = vld [vmem:[#allocation3 + $0x38] sm:$0xff]
    %s830 = scalar_lea.vmem %s3, 128
    %v831 = vld [vmem:[%s830] sm:$0xff]
    %v832 = vld [vmem:[%s830 + $0x8] sm:$0xff]
    %v833 = vld [vmem:[%s830 + $0x10] sm:$0xff]
    %v834 = vld [vmem:[%s830 + $0x18] sm:$0xff]
    %v835 = vld [vmem:[%s830 + $0x20] sm:$0xff]
    %v836 = vld [vmem:[%s830 + $0x28] sm:$0xff]
    %v837 = vld [vmem:[%s830 + $0x30] sm:$0xff]
    %v838 = vld [vmem:[%s830 + $0x38] sm:$0xff]
    %s839 = scalar_lea.vmem %s5, 2
    %v840 = vld [vmem:[%s839] sm:$0x1]
    %v842 = vperm.slane %v840, 0
    %v845 = vsel %vm173, %v822, 0
    %v848 = vsel %vm173, %v823, 0
    %v851 = vsel %vm173, %v824, 0
    %v854 = vsel %vm173, %v825, 0
    %v857 = vsel %vm173, %v826, 0
    %v860 = vsel %vm173, %v827, 0
    %v863 = vsel %vm173, %v828, 0
    %v866 = vsel %vm173, %v829, 0
    %868 = vmatpush.msra.mxu0 0.0
    %869 = vmatpush.msra.mxu0 0.0
    %870 = vmatpush.msra.mxu0 0.0
    %871 = vmatpush.msra.mxu0 0.0
    %872 = vmatpush.msra.mxu0 0.0
    %873 = vmatpush.msra.mxu0 0.0
    %874 = vmatpush.msra.mxu0 0.0
    %875 = vmatpush.msra.mxu0 0.0
    %876 = vmatpush.msra.mxu0 %v838
    %877 = vmatpush.msra.mxu0 %v837
    %878 = vmatpush.msra.mxu0 %v836
    %879 = vmatpush.msra.mxu0 %v835
    %880 = vmatpush.msra.mxu0 %v834
    %881 = vmatpush.msra.mxu0 %v833
    %882 = vmatpush.msra.mxu0 %v832
    %883 = vmatpush.msra.mxu0 %v831
    %884 = vmatmul.f32.gmra.mxu0 %v845
    %v885 = vpop.f32.mrf.mxu0
    %v886 = vadd.f32 %v842, %v885
    %887 = vmatmul.f32.gmra.mxu0 %v848
    %v888 = vpop.f32.mrf.mxu0
    %v889 = vadd.f32 %v842, %v888
    %890 = vmatmul.f32.gmra.mxu0 %v851
    %v891 = vpop.f32.mrf.mxu0
    %v892 = vadd.f32 %v842, %v891
    %893 = vmatmul.f32.gmra.mxu0 %v854
    %v894 = vpop.f32.mrf.mxu0
    %v895 = vadd.f32 %v842, %v894
    %896 = vmatmul.f32.gmra.mxu0 %v857
    %v897 = vpop.f32.mrf.mxu0
    %v898 = vadd.f32 %v842, %v897
    %899 = vmatmul.f32.gmra.mxu0 %v860
    %v900 = vpop.f32.mrf.mxu0
    %v901 = vadd.f32 %v842, %v900
    %902 = vmatmul.f32.gmra.mxu0 %v863
    %v903 = vpop.f32.mrf.mxu0
    %v904 = vadd.f32 %v842, %v903
    %905 = vmatmul.f32.gmra.mxu0 %v866
    %v906 = vpop.f32.mrf.mxu0
    %v907 = vadd.f32 %v842, %v906
    %908 = vdwg.mxu0
    %s909 = scalar_lea.vmem [#allocation4], 128
    %v910 = vld [vmem:[%s909] sm:$0xff]
    %v911 = vld [vmem:[%s909 + $0x8] sm:$0xff]
    %v912 = vld [vmem:[%s909 + $0x10] sm:$0xff]
    %v913 = vld [vmem:[%s909 + $0x18] sm:$0xff]
    %v914 = vld [vmem:[%s909 + $0x20] sm:$0xff]
    %v915 = vld [vmem:[%s909 + $0x28] sm:$0xff]
    %v916 = vld [vmem:[%s909 + $0x30] sm:$0xff]
    %v917 = vld [vmem:[%s909 + $0x38] sm:$0xff]
    %v918 = vsel %vm160, %v886, %v907
    %919 = vmatpush.msra.mxu0 0.0
    %920 = vmatpush.msra.mxu0 0.0
    %921 = vmatpush.msra.mxu0 0.0
    %922 = vmatpush.msra.mxu0 0.0
    %923 = vmatpush.msra.mxu0 0.0
    %924 = vmatpush.msra.mxu0 0.0
    %925 = vmatpush.msra.mxu0 0.0
    %926 = vmatpush.msra.mxu0 0.0
    %927 = vmatpush.msra.mxu0 %v917
    %928 = vmatpush.msra.mxu0 %v916
    %929 = vmatpush.msra.mxu0 %v915
    %930 = vmatpush.msra.mxu0 %v914
    %931 = vmatpush.msra.mxu0 %v913
    %932 = vmatpush.msra.mxu0 %v912
    %933 = vmatpush.msra.mxu0 %v911
    %934 = vmatpush.msra.mxu0 %v910
    %935 = vmatmul.f32.gmra.mxu0 %v249
    %v936 = vpop.f32.mrf.mxu0
    %v937 = vadd.f32 0.0, %v936
    %938 = vdwg.mxu0
    %v939 = vadd.f32 %v918, %v937
    %v940 = vtanh.pop %v939
    %v941 = vld [vmem:[%s1] sm:$0xff]
    %v942 = vmul.f32 %v940, %v941
    %943 = vst.msk [vmem:[#allocation2] sm:$0xff] %vm275, %v942
    %944 = vst.msk [vmem:[#allocation2 + $0x38] sm:$0xff] %vm277, %v942
    %v945 = vsel %vm160, %v889, %v904
    %v947 = vsel %vm173, %v942, 0
    %949 = vmatpush.msra.mxu0 0.0
    %950 = vmatpush.msra.mxu0 0.0
    %951 = vmatpush.msra.mxu0 0.0
    %952 = vmatpush.msra.mxu0 0.0
    %953 = vmatpush.msra.mxu0 0.0
    %954 = vmatpush.msra.mxu0 0.0
    %955 = vmatpush.msra.mxu0 0.0
    %956 = vmatpush.msra.mxu0 0.0
    %957 = vmatpush.msra.mxu0 %v917
    %958 = vmatpush.msra.mxu0 %v916
    %959 = vmatpush.msra.mxu0 %v915
    %960 = vmatpush.msra.mxu0 %v914
    %961 = vmatpush.msra.mxu0 %v913
    %962 = vmatpush.msra.mxu0 %v912
    %963 = vmatpush.msra.mxu0 %v911
    %964 = vmatpush.msra.mxu0 %v910
    %965 = vmatmul.f32.gmra.mxu0 %v947
    %v966 = vpop.f32.mrf.mxu0
    %v967 = vadd.f32 0.0, %v966
    %968 = vdwg.mxu0
    %v969 = vadd.f32 %v945, %v967
    %v970 = vtanh.pop %v969
    %v971 = vld [vmem:[%s1 + $0x8] sm:$0xff]
    %v972 = vmul.f32 %v970, %v971
    %973 = vst.msk [vmem:[#allocation2 + $0x8] sm:$0xff] %vm275, %v972
    %974 = vst.msk [vmem:[#allocation2 + $0x30] sm:$0xff] %vm277, %v972
    %v975 = vsel %vm160, %v892, %v901
    %v977 = vsel %vm173, %v972, 0
    %979 = vmatpush.msra.mxu0 0.0
    %980 = vmatpush.msra.mxu0 0.0
    %981 = vmatpush.msra.mxu0 0.0
    %982 = vmatpush.msra.mxu0 0.0
    %983 = vmatpush.msra.mxu0 0.0
    %984 = vmatpush.msra.mxu0 0.0
    %985 = vmatpush.msra.mxu0 0.0
    %986 = vmatpush.msra.mxu0 0.0
    %987 = vmatpush.msra.mxu0 %v917
    %988 = vmatpush.msra.mxu0 %v916
    %989 = vmatpush.msra.mxu0 %v915
    %990 = vmatpush.msra.mxu0 %v914
    %991 = vmatpush.msra.mxu0 %v913
    %992 = vmatpush.msra.mxu0 %v912
    %993 = vmatpush.msra.mxu0 %v911
    %994 = vmatpush.msra.mxu0 %v910
    %995 = vmatmul.f32.gmra.mxu0 %v977
    %v996 = vpop.f32.mrf.mxu0
    %v997 = vadd.f32 0.0, %v996
    %998 = vdwg.mxu0
    %v999 = vadd.f32 %v975, %v997
    %v1000 = vtanh.pop %v999
    %v1001 = vld [vmem:[%s1 + $0x10] sm:$0xff]
    %v1002 = vmul.f32 %v1000, %v1001
    %1003 = vst.msk [vmem:[#allocation2 + $0x10] sm:$0xff] %vm275, %v1002
    %1004 = vst.msk [vmem:[#allocation2 + $0x28] sm:$0xff] %vm277, %v1002
    %v1005 = vsel %vm160, %v895, %v898
    %v1007 = vsel %vm173, %v1002, 0
    %1009 = vmatpush.msra.mxu0 0.0
    %1010 = vmatpush.msra.mxu0 0.0
    %1011 = vmatpush.msra.mxu0 0.0
    %1012 = vmatpush.msra.mxu0 0.0
    %1013 = vmatpush.msra.mxu0 0.0
    %1014 = vmatpush.msra.mxu0 0.0
    %1015 = vmatpush.msra.mxu0 0.0
    %1016 = vmatpush.msra.mxu0 0.0
    %1017 = vmatpush.msra.mxu0 %v917
    %1018 = vmatpush.msra.mxu0 %v916
    %1019 = vmatpush.msra.mxu0 %v915
    %1020 = vmatpush.msra.mxu0 %v914
    %1021 = vmatpush.msra.mxu0 %v913
    %1022 = vmatpush.msra.mxu0 %v912
    %1023 = vmatpush.msra.mxu0 %v911
    %1024 = vmatpush.msra.mxu0 %v910
    %1025 = vmatmul.f32.gmra.mxu0 %v1007
    %v1026 = vpop.f32.mrf.mxu0
    %v1027 = vadd.f32 0.0, %v1026
    %1028 = vdwg.mxu0
    %v1029 = vadd.f32 %v1005, %v1027
    %v1030 = vtanh.pop %v1029
    %v1031 = vld [vmem:[%s1 + $0x18] sm:$0xff]
    %v1032 = vmul.f32 %v1030, %v1031
    %1033 = vst.msk [vmem:[#allocation2 + $0x18] sm:$0xff] %vm275, %v1032
    %1034 = vst.msk [vmem:[#allocation2 + $0x20] sm:$0xff] %vm277, %v1032
    %v1035 = vsel %vm160, %v898, %v895
    %v1037 = vsel %vm173, %v1032, 0
    %1039 = vmatpush.msra.mxu0 0.0
    %1040 = vmatpush.msra.mxu0 0.0
    %1041 = vmatpush.msra.mxu0 0.0
    %1042 = vmatpush.msra.mxu0 0.0
    %1043 = vmatpush.msra.mxu0 0.0
    %1044 = vmatpush.msra.mxu0 0.0
    %1045 = vmatpush.msra.mxu0 0.0
    %1046 = vmatpush.msra.mxu0 0.0
    %1047 = vmatpush.msra.mxu0 %v917
    %1048 = vmatpush.msra.mxu0 %v916
    %1049 = vmatpush.msra.mxu0 %v915
    %1050 = vmatpush.msra.mxu0 %v914
    %1051 = vmatpush.msra.mxu0 %v913
    %1052 = vmatpush.msra.mxu0 %v912
    %1053 = vmatpush.msra.mxu0 %v911
    %1054 = vmatpush.msra.mxu0 %v910
    %1055 = vmatmul.f32.gmra.mxu0 %v1037
    %v1056 = vpop.f32.mrf.mxu0
    %v1057 = vadd.f32 0.0, %v1056
    %1058 = vdwg.mxu0
    %v1059 = vadd.f32 %v1035, %v1057
    %v1060 = vtanh.pop %v1059
    %v1061 = vld [vmem:[%s1 + $0x20] sm:$0xff]
    %v1062 = vmul.f32 %v1060, %v1061
    %1063 = vst.msk [vmem:[#allocation2 + $0x20] sm:$0xff] %vm275, %v1062
    %1064 = vst.msk [vmem:[#allocation2 + $0x18] sm:$0xff] %vm277, %v1062
    %v1065 = vsel %vm160, %v901, %v892
    %v1067 = vsel %vm173, %v1062, 0
    %1069 = vmatpush.msra.mxu0 0.0
    %1070 = vmatpush.msra.mxu0 0.0
    %1071 = vmatpush.msra.mxu0 0.0
    %1072 = vmatpush.msra.mxu0 0.0
    %1073 = vmatpush.msra.mxu0 0.0
    %1074 = vmatpush.msra.mxu0 0.0
    %1075 = vmatpush.msra.mxu0 0.0
    %1076 = vmatpush.msra.mxu0 0.0
    %1077 = vmatpush.msra.mxu0 %v917
    %1078 = vmatpush.msra.mxu0 %v916
    %1079 = vmatpush.msra.mxu0 %v915
    %1080 = vmatpush.msra.mxu0 %v914
    %1081 = vmatpush.msra.mxu0 %v913
    %1082 = vmatpush.msra.mxu0 %v912
    %1083 = vmatpush.msra.mxu0 %v911
    %1084 = vmatpush.msra.mxu0 %v910
    %1085 = vmatmul.f32.gmra.mxu0 %v1067
    %v1086 = vpop.f32.mrf.mxu0
    %v1087 = vadd.f32 0.0, %v1086
    %1088 = vdwg.mxu0
    %v1089 = vadd.f32 %v1065, %v1087
    %v1090 = vtanh.pop %v1089
    %v1091 = vld [vmem:[%s1 + $0x28] sm:$0xff]
    %v1092 = vmul.f32 %v1090, %v1091
    %1093 = vst.msk [vmem:[#allocation2 + $0x28] sm:$0xff] %vm275, %v1092
    %1094 = vst.msk [vmem:[#allocation2 + $0x10] sm:$0xff] %vm277, %v1092
    %v1095 = vsel %vm160, %v904, %v889
    %v1097 = vsel %vm173, %v1092, 0
    %1099 = vmatpush.msra.mxu0 0.0
    %1100 = vmatpush.msra.mxu0 0.0
    %1101 = vmatpush.msra.mxu0 0.0
    %1102 = vmatpush.msra.mxu0 0.0
    %1103 = vmatpush.msra.mxu0 0.0
    %1104 = vmatpush.msra.mxu0 0.0
    %1105 = vmatpush.msra.mxu0 0.0
    %1106 = vmatpush.msra.mxu0 0.0
    %1107 = vmatpush.msra.mxu0 %v917
    %1108 = vmatpush.msra.mxu0 %v916
    %1109 = vmatpush.msra.mxu0 %v915
    %1110 = vmatpush.msra.mxu0 %v914
    %1111 = vmatpush.msra.mxu0 %v913
    %1112 = vmatpush.msra.mxu0 %v912
    %1113 = vmatpush.msra.mxu0 %v911
    %1114 = vmatpush.msra.mxu0 %v910
    %1115 = vmatmul.f32.gmra.mxu0 %v1097
    %v1116 = vpop.f32.mrf.mxu0
    %v1117 = vadd.f32 0.0, %v1116
    %1118 = vdwg.mxu0
    %v1119 = vadd.f32 %v1095, %v1117
    %v1120 = vtanh.pop %v1119
    %v1121 = vld [vmem:[%s1 + $0x30] sm:$0xff]
    %v1122 = vmul.f32 %v1120, %v1121
    %1123 = vst.msk [vmem:[#allocation2 + $0x30] sm:$0xff] %vm275, %v1122
    %1124 = vst.msk [vmem:[#allocation2 + $0x8] sm:$0xff] %vm277, %v1122
    %v1125 = vsel %vm160, %v907, %v886
    %v1127 = vsel %vm173, %v1122, 0
    %1129 = vmatpush.msra.mxu0 0.0
    %1130 = vmatpush.msra.mxu0 0.0
    %1131 = vmatpush.msra.mxu0 0.0
    %1132 = vmatpush.msra.mxu0 0.0
    %1133 = vmatpush.msra.mxu0 0.0
    %1134 = vmatpush.msra.mxu0 0.0
    %1135 = vmatpush.msra.mxu0 0.0
    %1136 = vmatpush.msra.mxu0 0.0
    %1137 = vmatpush.msra.mxu0 %v917
    %1138 = vmatpush.msra.mxu0 %v916
    %1139 = vmatpush.msra.mxu0 %v915
    %1140 = vmatpush.msra.mxu0 %v914
    %1141 = vmatpush.msra.mxu0 %v913
    %1142 = vmatpush.msra.mxu0 %v912
    %1143 = vmatpush.msra.mxu0 %v911
    %1144 = vmatpush.msra.mxu0 %v910
    %1145 = vmatmul.f32.gmra.mxu0 %v1127
    %v1146 = vpop.f32.mrf.mxu0
    %v1147 = vadd.f32 0.0, %v1146
    %1148 = vdwg.mxu0
    %v1149 = vadd.f32 %v1125, %v1147
    %v1150 = vtanh.pop %v1149
    %v1151 = vld [vmem:[%s1 + $0x38] sm:$0xff]
    %v1152 = vmul.f32 %v1150, %v1151
    %1153 = vst.msk [vmem:[#allocation2 + $0x38] sm:$0xff] %vm275, %v1152
    %1154 = vst.msk [vmem:[#allocation2] sm:$0xff] %vm277, %v1152
    %v1155 = vld [vmem:[#allocation2] sm:$0xff]
    %v1156 = vld [vmem:[#allocation2 + $0x8] sm:$0xff]
    %v1157 = vld [vmem:[#allocation2 + $0x10] sm:$0xff]
    %v1158 = vld [vmem:[#allocation2 + $0x18] sm:$0xff]
    %v1159 = vld [vmem:[#allocation2 + $0x20] sm:$0xff]
    %v1160 = vld [vmem:[#allocation2 + $0x28] sm:$0xff]
    %v1161 = vld [vmem:[#allocation2 + $0x30] sm:$0xff]
    %v1162 = vld [vmem:[#allocation2 + $0x38] sm:$0xff]
    %s1163 = scalar_lea.vmem %s3, 192
    %v1164 = vld [vmem:[%s1163] sm:$0xff]
    %v1165 = vld [vmem:[%s1163 + $0x8] sm:$0xff]
    %v1166 = vld [vmem:[%s1163 + $0x10] sm:$0xff]
    %v1167 = vld [vmem:[%s1163 + $0x18] sm:$0xff]
    %v1168 = vld [vmem:[%s1163 + $0x20] sm:$0xff]
    %v1169 = vld [vmem:[%s1163 + $0x28] sm:$0xff]
    %v1170 = vld [vmem:[%s1163 + $0x30] sm:$0xff]
    %v1171 = vld [vmem:[%s1163 + $0x38] sm:$0xff]
    %s1172 = scalar_lea.vmem %s5, 3
    %v1173 = vld [vmem:[%s1172] sm:$0x1]
    %v1175 = vperm.slane %v1173, 0
    %v1178 = vsel %vm173, %v1155, 0
    %v1181 = vsel %vm173, %v1156, 0
    %v1184 = vsel %vm173, %v1157, 0
    %v1187 = vsel %vm173, %v1158, 0
    %v1190 = vsel %vm173, %v1159, 0
    %v1193 = vsel %vm173, %v1160, 0
    %v1196 = vsel %vm173, %v1161, 0
    %v1199 = vsel %vm173, %v1162, 0
    %1201 = vmatpush.msra.mxu0 0.0
    %1202 = vmatpush.msra.mxu0 0.0
    %1203 = vmatpush.msra.mxu0 0.0
    %1204 = vmatpush.msra.mxu0 0.0
    %1205 = vmatpush.msra.mxu0 0.0
    %1206 = vmatpush.msra.mxu0 0.0
    %1207 = vmatpush.msra.mxu0 0.0
    %1208 = vmatpush.msra.mxu0 0.0
    %1209 = vmatpush.msra.mxu0 %v1171
    %1210 = vmatpush.msra.mxu0 %v1170
    %1211 = vmatpush.msra.mxu0 %v1169
    %1212 = vmatpush.msra.mxu0 %v1168
    %1213 = vmatpush.msra.mxu0 %v1167
    %1214 = vmatpush.msra.mxu0 %v1166
    %1215 = vmatpush.msra.mxu0 %v1165
    %1216 = vmatpush.msra.mxu0 %v1164
    %1217 = vmatmul.f32.gmra.mxu0 %v1178
    %v1218 = vpop.f32.mrf.mxu0
    %v1219 = vadd.f32 %v1175, %v1218
    %1220 = vmatmul.f32.gmra.mxu0 %v1181
    %v1221 = vpop.f32.mrf.mxu0
    %v1222 = vadd.f32 %v1175, %v1221
    %1223 = vmatmul.f32.gmra.mxu0 %v1184
    %v1224 = vpop.f32.mrf.mxu0
    %v1225 = vadd.f32 %v1175, %v1224
    %1226 = vmatmul.f32.gmra.mxu0 %v1187
    %v1227 = vpop.f32.mrf.mxu0
    %v1228 = vadd.f32 %v1175, %v1227
    %1229 = vmatmul.f32.gmra.mxu0 %v1190
    %v1230 = vpop.f32.mrf.mxu0
    %v1231 = vadd.f32 %v1175, %v1230
    %1232 = vmatmul.f32.gmra.mxu0 %v1193
    %v1233 = vpop.f32.mrf.mxu0
    %v1234 = vadd.f32 %v1175, %v1233
    %1235 = vmatmul.f32.gmra.mxu0 %v1196
    %v1236 = vpop.f32.mrf.mxu0
    %v1237 = vadd.f32 %v1175, %v1236
    %1238 = vmatmul.f32.gmra.mxu0 %v1199
    %v1239 = vpop.f32.mrf.mxu0
    %v1240 = vadd.f32 %v1175, %v1239
    %1241 = vdwg.mxu0
    %s1242 = scalar_lea.vmem [#allocation4], 192
    %v1243 = vld [vmem:[%s1242] sm:$0xff]
    %v1244 = vld [vmem:[%s1242 + $0x8] sm:$0xff]
    %v1245 = vld [vmem:[%s1242 + $0x10] sm:$0xff]
    %v1246 = vld [vmem:[%s1242 + $0x18] sm:$0xff]
    %v1247 = vld [vmem:[%s1242 + $0x20] sm:$0xff]
    %v1248 = vld [vmem:[%s1242 + $0x28] sm:$0xff]
    %v1249 = vld [vmem:[%s1242 + $0x30] sm:$0xff]
    %v1250 = vld [vmem:[%s1242 + $0x38] sm:$0xff]
    %v1251 = vsel %vm160, %v1219, %v1240
    %1252 = vmatpush.msra.mxu0 0.0
    %1253 = vmatpush.msra.mxu0 0.0
    %1254 = vmatpush.msra.mxu0 0.0
    %1255 = vmatpush.msra.mxu0 0.0
    %1256 = vmatpush.msra.mxu0 0.0
    %1257 = vmatpush.msra.mxu0 0.0
    %1258 = vmatpush.msra.mxu0 0.0
    %1259 = vmatpush.msra.mxu0 0.0
    %1260 = vmatpush.msra.mxu0 %v1250
    %1261 = vmatpush.msra.mxu0 %v1249
    %1262 = vmatpush.msra.mxu0 %v1248
    %1263 = vmatpush.msra.mxu0 %v1247
    %1264 = vmatpush.msra.mxu0 %v1246
    %1265 = vmatpush.msra.mxu0 %v1245
    %1266 = vmatpush.msra.mxu0 %v1244
    %1267 = vmatpush.msra.mxu0 %v1243
    %1268 = vmatmul.f32.gmra.mxu0 %v249
    %v1269 = vpop.f32.mrf.mxu0
    %v1270 = vadd.f32 0.0, %v1269
    %1271 = vdwg.mxu0
    %v1272 = vadd.f32 %v1251, %v1270
    %v1273 = vtanh.pop %v1272
    %v1274 = vld [vmem:[%s1] sm:$0xff]
    %v1275 = vmul.f32 %v1273, %v1274
    %1276 = vst.msk [vmem:[#allocation3] sm:$0xff] %vm275, %v1275
    %1277 = vst.msk [vmem:[#allocation3 + $0x38] sm:$0xff] %vm277, %v1275
    %v1278 = vsel %vm160, %v1222, %v1237
    %v1280 = vsel %vm173, %v1275, 0
    %1282 = vmatpush.msra.mxu0 0.0
    %1283 = vmatpush.msra.mxu0 0.0
    %1284 = vmatpush.msra.mxu0 0.0
    %1285 = vmatpush.msra.mxu0 0.0
    %1286 = vmatpush.msra.mxu0 0.0
    %1287 = vmatpush.msra.mxu0 0.0
    %1288 = vmatpush.msra.mxu0 0.0
    %1289 = vmatpush.msra.mxu0 0.0
    %1290 = vmatpush.msra.mxu0 %v1250
    %1291 = vmatpush.msra.mxu0 %v1249
    %1292 = vmatpush.msra.mxu0 %v1248
    %1293 = vmatpush.msra.mxu0 %v1247
    %1294 = vmatpush.msra.mxu0 %v1246
    %1295 = vmatpush.msra.mxu0 %v1245
    %1296 = vmatpush.msra.mxu0 %v1244
    %1297 = vmatpush.msra.mxu0 %v1243
    %1298 = vmatmul.f32.gmra.mxu0 %v1280
    %v1299 = vpop.f32.mrf.mxu0
    %v1300 = vadd.f32 0.0, %v1299
    %1301 = vdwg.mxu0
    %v1302 = vadd.f32 %v1278, %v1300
    %v1303 = vtanh.pop %v1302
    %v1304 = vld [vmem:[%s1 + $0x8] sm:$0xff]
    %v1305 = vmul.f32 %v1303, %v1304
    %1306 = vst.msk [vmem:[#allocation3 + $0x8] sm:$0xff] %vm275, %v1305
    %1307 = vst.msk [vmem:[#allocation3 + $0x30] sm:$0xff] %vm277, %v1305
    %v1308 = vsel %vm160, %v1225, %v1234
    %v1310 = vsel %vm173, %v1305, 0
    %1312 = vmatpush.msra.mxu0 0.0
    %1313 = vmatpush.msra.mxu0 0.0
    %1314 = vmatpush.msra.mxu0 0.0
    %1315 = vmatpush.msra.mxu0 0.0
    %1316 = vmatpush.msra.mxu0 0.0
    %1317 = vmatpush.msra.mxu0 0.0
    %1318 = vmatpush.msra.mxu0 0.0
    %1319 = vmatpush.msra.mxu0 0.0
    %1320 = vmatpush.msra.mxu0 %v1250
    %1321 = vmatpush.msra.mxu0 %v1249
    %1322 = vmatpush.msra.mxu0 %v1248
    %1323 = vmatpush.msra.mxu0 %v1247
    %1324 = vmatpush.msra.mxu0 %v1246
    %1325 = vmatpush.msra.mxu0 %v1245
    %1326 = vmatpush.msra.mxu0 %v1244
    %1327 = vmatpush.msra.mxu0 %v1243
    %1328 = vmatmul.f32.gmra.mxu0 %v1310
    %v1329 = vpop.f32.mrf.mxu0
    %v1330 = vadd.f32 0.0, %v1329
    %1331 = vdwg.mxu0
    %v1332 = vadd.f32 %v1308, %v1330
    %v1333 = vtanh.pop %v1332
    %v1334 = vld [vmem:[%s1 + $0x10] sm:$0xff]
    %v1335 = vmul.f32 %v1333, %v1334
    %1336 = vst.msk [vmem:[#allocation3 + $0x10] sm:$0xff] %vm275, %v1335
    %1337 = vst.msk [vmem:[#allocation3 + $0x28] sm:$0xff] %vm277, %v1335
    %v1338 = vsel %vm160, %v1228, %v1231
    %v1340 = vsel %vm173, %v1335, 0
    %1342 = vmatpush.msra.mxu0 0.0
    %1343 = vmatpush.msra.mxu0 0.0
    %1344 = vmatpush.msra.mxu0 0.0
    %1345 = vmatpush.msra.mxu0 0.0
    %1346 = vmatpush.msra.mxu0 0.0
    %1347 = vmatpush.msra.mxu0 0.0
    %1348 = vmatpush.msra.mxu0 0.0
    %1349 = vmatpush.msra.mxu0 0.0
    %1350 = vmatpush.msra.mxu0 %v1250
    %1351 = vmatpush.msra.mxu0 %v1249
    %1352 = vmatpush.msra.mxu0 %v1248
    %1353 = vmatpush.msra.mxu0 %v1247
    %1354 = vmatpush.msra.mxu0 %v1246
    %1355 = vmatpush.msra.mxu0 %v1245
    %1356 = vmatpush.msra.mxu0 %v1244
    %1357 = vmatpush.msra.mxu0 %v1243
    %1358 = vmatmul.f32.gmra.mxu0 %v1340
    %v1359 = vpop.f32.mrf.mxu0
    %v1360 = vadd.f32 0.0, %v1359
    %1361 = vdwg.mxu0
    %v1362 = vadd.f32 %v1338, %v1360
    %v1363 = vtanh.pop %v1362
    %v1364 = vld [vmem:[%s1 + $0x18] sm:$0xff]
    %v1365 = vmul.f32 %v1363, %v1364
    %1366 = vst.msk [vmem:[#allocation3 + $0x18] sm:$0xff] %vm275, %v1365
    %1367 = vst.msk [vmem:[#allocation3 + $0x20] sm:$0xff] %vm277, %v1365
    %v1368 = vsel %vm160, %v1231, %v1228
    %v1370 = vsel %vm173, %v1365, 0
    %1372 = vmatpush.msra.mxu0 0.0
    %1373 = vmatpush.msra.mxu0 0.0
    %1374 = vmatpush.msra.mxu0 0.0
    %1375 = vmatpush.msra.mxu0 0.0
    %1376 = vmatpush.msra.mxu0 0.0
    %1377 = vmatpush.msra.mxu0 0.0
    %1378 = vmatpush.msra.mxu0 0.0
    %1379 = vmatpush.msra.mxu0 0.0
    %1380 = vmatpush.msra.mxu0 %v1250
    %1381 = vmatpush.msra.mxu0 %v1249
    %1382 = vmatpush.msra.mxu0 %v1248
    %1383 = vmatpush.msra.mxu0 %v1247
    %1384 = vmatpush.msra.mxu0 %v1246
    %1385 = vmatpush.msra.mxu0 %v1245
    %1386 = vmatpush.msra.mxu0 %v1244
    %1387 = vmatpush.msra.mxu0 %v1243
    %1388 = vmatmul.f32.gmra.mxu0 %v1370
    %v1389 = vpop.f32.mrf.mxu0
    %v1390 = vadd.f32 0.0, %v1389
    %1391 = vdwg.mxu0
    %v1392 = vadd.f32 %v1368, %v1390
    %v1393 = vtanh.pop %v1392
    %v1394 = vld [vmem:[%s1 + $0x20] sm:$0xff]
    %v1395 = vmul.f32 %v1393, %v1394
    %1396 = vst.msk [vmem:[#allocation3 + $0x20] sm:$0xff] %vm275, %v1395
    %1397 = vst.msk [vmem:[#allocation3 + $0x18] sm:$0xff] %vm277, %v1395
    %v1398 = vsel %vm160, %v1234, %v1225
    %v1400 = vsel %vm173, %v1395, 0
    %1402 = vmatpush.msra.mxu0 0.0
    %1403 = vmatpush.msra.mxu0 0.0
    %1404 = vmatpush.msra.mxu0 0.0
    %1405 = vmatpush.msra.mxu0 0.0
    %1406 = vmatpush.msra.mxu0 0.0
    %1407 = vmatpush.msra.mxu0 0.0
    %1408 = vmatpush.msra.mxu0 0.0
    %1409 = vmatpush.msra.mxu0 0.0
    %1410 = vmatpush.msra.mxu0 %v1250
    %1411 = vmatpush.msra.mxu0 %v1249
    %1412 = vmatpush.msra.mxu0 %v1248
    %1413 = vmatpush.msra.mxu0 %v1247
    %1414 = vmatpush.msra.mxu0 %v1246
    %1415 = vmatpush.msra.mxu0 %v1245
    %1416 = vmatpush.msra.mxu0 %v1244
    %1417 = vmatpush.msra.mxu0 %v1243
    %1418 = vmatmul.f32.gmra.mxu0 %v1400
    %v1419 = vpop.f32.mrf.mxu0
    %v1420 = vadd.f32 0.0, %v1419
    %1421 = vdwg.mxu0
    %v1422 = vadd.f32 %v1398, %v1420
    %v1423 = vtanh.pop %v1422
    %v1424 = vld [vmem:[%s1 + $0x28] sm:$0xff]
    %v1425 = vmul.f32 %v1423, %v1424
    %1426 = vst.msk [vmem:[#allocation3 + $0x28] sm:$0xff] %vm275, %v1425
    %1427 = vst.msk [vmem:[#allocation3 + $0x10] sm:$0xff] %vm277, %v1425
    %v1428 = vsel %vm160, %v1237, %v1222
    %v1430 = vsel %vm173, %v1425, 0
    %1432 = vmatpush.msra.mxu0 0.0
    %1433 = vmatpush.msra.mxu0 0.0
    %1434 = vmatpush.msra.mxu0 0.0
    %1435 = vmatpush.msra.mxu0 0.0
    %1436 = vmatpush.msra.mxu0 0.0
    %1437 = vmatpush.msra.mxu0 0.0
    %1438 = vmatpush.msra.mxu0 0.0
    %1439 = vmatpush.msra.mxu0 0.0
    %1440 = vmatpush.msra.mxu0 %v1250
    %1441 = vmatpush.msra.mxu0 %v1249
    %1442 = vmatpush.msra.mxu0 %v1248
    %1443 = vmatpush.msra.mxu0 %v1247
    %1444 = vmatpush.msra.mxu0 %v1246
    %1445 = vmatpush.msra.mxu0 %v1245
    %1446 = vmatpush.msra.mxu0 %v1244
    %1447 = vmatpush.msra.mxu0 %v1243
    %1448 = vmatmul.f32.gmra.mxu0 %v1430
    %v1449 = vpop.f32.mrf.mxu0
    %v1450 = vadd.f32 0.0, %v1449
    %1451 = vdwg.mxu0
    %v1452 = vadd.f32 %v1428, %v1450
    %v1453 = vtanh.pop %v1452
    %v1454 = vld [vmem:[%s1 + $0x30] sm:$0xff]
    %v1455 = vmul.f32 %v1453, %v1454
    %1456 = vst.msk [vmem:[#allocation3 + $0x30] sm:$0xff] %vm275, %v1455
    %1457 = vst.msk [vmem:[#allocation3 + $0x8] sm:$0xff] %vm277, %v1455
    %v1458 = vsel %vm160, %v1240, %v1219
    %v1460 = vsel %vm173, %v1455, 0
    %1462 = vmatpush.msra.mxu0 0.0
    %1463 = vmatpush.msra.mxu0 0.0
    %1464 = vmatpush.msra.mxu0 0.0
    %1465 = vmatpush.msra.mxu0 0.0
    %1466 = vmatpush.msra.mxu0 0.0
    %1467 = vmatpush.msra.mxu0 0.0
    %1468 = vmatpush.msra.mxu0 0.0
    %1469 = vmatpush.msra.mxu0 0.0
    %1470 = vmatpush.msra.mxu0 %v1250
    %1471 = vmatpush.msra.mxu0 %v1249
    %1472 = vmatpush.msra.mxu0 %v1248
    %1473 = vmatpush.msra.mxu0 %v1247
    %1474 = vmatpush.msra.mxu0 %v1246
    %1475 = vmatpush.msra.mxu0 %v1245
    %1476 = vmatpush.msra.mxu0 %v1244
    %1477 = vmatpush.msra.mxu0 %v1243
    %1478 = vmatmul.f32.gmra.mxu0 %v1460
    %v1479 = vpop.f32.mrf.mxu0
    %v1480 = vadd.f32 0.0, %v1479
    %1481 = vdwg.mxu0
    %v1482 = vadd.f32 %v1458, %v1480
    %v1483 = vtanh.pop %v1482
    %v1484 = vld [vmem:[%s1 + $0x38] sm:$0xff]
    %v1485 = vmul.f32 %v1483, %v1484
    %1486 = vst.msk [vmem:[#allocation3 + $0x38] sm:$0xff] %vm275, %v1485
    %1487 = vst.msk [vmem:[#allocation3] sm:$0xff] %vm277, %v1485
    %v1488 = vld [vmem:[#allocation3] sm:$0xff]
    %v1489 = vld [vmem:[#allocation3 + $0x8] sm:$0xff]
    %v1490 = vld [vmem:[#allocation3 + $0x10] sm:$0xff]
    %v1491 = vld [vmem:[#allocation3 + $0x18] sm:$0xff]
    %v1492 = vld [vmem:[#allocation3 + $0x20] sm:$0xff]
    %v1493 = vld [vmem:[#allocation3 + $0x28] sm:$0xff]
    %v1494 = vld [vmem:[#allocation3 + $0x30] sm:$0xff]
    %v1495 = vld [vmem:[#allocation3 + $0x38] sm:$0xff]
    %v1496 = vld [vmem:[%s6] sm:$0xff]
    %v1497 = vld [vmem:[%s6 + $0x8] sm:$0xff]
    %v1498 = vld [vmem:[%s6 + $0x10] sm:$0xff]
    %v1499 = vld [vmem:[%s6 + $0x18] sm:$0xff]
    %v1500 = vld [vmem:[%s6 + $0x20] sm:$0xff]
    %v1501 = vld [vmem:[%s6 + $0x28] sm:$0xff]
    %v1502 = vld [vmem:[%s6 + $0x30] sm:$0xff]
    %v1503 = vld [vmem:[%s6 + $0x38] sm:$0xff]
    %v1504 = vld [vmem:[%s7] sm:$0x1]
    %v1506 = vperm.slane %v1504, 0
    %v1509 = vsel %vm173, %v1488, 0
    %v1512 = vsel %vm173, %v1489, 0
    %v1515 = vsel %vm173, %v1490, 0
    %v1518 = vsel %vm173, %v1491, 0
    %v1521 = vsel %vm173, %v1492, 0
    %v1524 = vsel %vm173, %v1493, 0
    %v1527 = vsel %vm173, %v1494, 0
    %v1530 = vsel %vm173, %v1495, 0
    %1532 = vmatpush.msra.mxu0 0.0
    %1533 = vmatpush.msra.mxu0 0.0
    %1534 = vmatpush.msra.mxu0 0.0
    %1535 = vmatpush.msra.mxu0 0.0
    %1536 = vmatpush.msra.mxu0 0.0
    %1537 = vmatpush.msra.mxu0 0.0
    %1538 = vmatpush.msra.mxu0 0.0
    %1539 = vmatpush.msra.mxu0 0.0
    %1540 = vmatpush.msra.mxu0 %v1503
    %1541 = vmatpush.msra.mxu0 %v1502
    %1542 = vmatpush.msra.mxu0 %v1501
    %1543 = vmatpush.msra.mxu0 %v1500
    %1544 = vmatpush.msra.mxu0 %v1499
    %1545 = vmatpush.msra.mxu0 %v1498
    %1546 = vmatpush.msra.mxu0 %v1497
    %1547 = vmatpush.msra.mxu0 %v1496
    %1548 = vmatmul.f32.gmra.mxu0 %v1509
    %v1549 = vpop.f32.mrf.mxu0
    %v1550 = vadd.f32 %v1506, %v1549
    %1551 = vmatmul.f32.gmra.mxu0 %v1512
    %v1552 = vpop.f32.mrf.mxu0
    %v1553 = vadd.f32 %v1506, %v1552
    %1554 = vmatmul.f32.gmra.mxu0 %v1515
    %v1555 = vpop.f32.mrf.mxu0
    %v1556 = vadd.f32 %v1506, %v1555
    %1557 = vmatmul.f32.gmra.mxu0 %v1518
    %v1558 = vpop.f32.mrf.mxu0
    %v1559 = vadd.f32 %v1506, %v1558
    %1560 = vmatmul.f32.gmra.mxu0 %v1521
    %v1561 = vpop.f32.mrf.mxu0
    %v1562 = vadd.f32 %v1506, %v1561
    %1563 = vmatmul.f32.gmra.mxu0 %v1524
    %v1564 = vpop.f32.mrf.mxu0
    %v1565 = vadd.f32 %v1506, %v1564
    %1566 = vmatmul.f32.gmra.mxu0 %v1527
    %v1567 = vpop.f32.mrf.mxu0
    %v1568 = vadd.f32 %v1506, %v1567
    %1569 = vmatmul.f32.gmra.mxu0 %v1530
    %v1570 = vpop.f32.mrf.mxu0
    %v1571 = vadd.f32 %v1506, %v1570
    %1572 = vdwg.mxu0
    %1573 = vst [vmem:[%s8] sm:$0xff] %v1550
    %1574 = vst [vmem:[%s8 + $0x8] sm:$0xff] %v1553
    %1575 = vst [vmem:[%s8 + $0x10] sm:$0xff] %v1556
    %1576 = vst [vmem:[%s8 + $0x18] sm:$0xff] %v1559
    %1577 = vst [vmem:[%s8 + $0x20] sm:$0xff] %v1562
    %1578 = vst [vmem:[%s8 + $0x28] sm:$0xff] %v1565
    %1579 = vst [vmem:[%s8 + $0x30] sm:$0xff] %v1568
    %1580 = vst [vmem:[%s8 + $0x38] sm:$0xff] %v1571
    // Predicated region
    $region38: #{bilstm_ner_forward.1} parent=1 // pred_check
      _
    $region39: #{bilstm_ner_forward.1} parent=1 // pred_check_branch
      %1582 = sbr.rel (0) target = $region41
    $region40: #{bilstm_ner_forward.1} parent=1 // pred_region
      _
    $region41: #{bilstm_ner_forward.1} parent=1 // pred_fallthru
      _
    // Predicated region
    $region42: #{bilstm_ner_forward.1} parent=1 // pred_check
      _
    $region43: #{bilstm_ner_forward.1} parent=1 // pred_check_branch
      %1584 = sbr.rel (0) target = $region45
    $region44: #{bilstm_ner_forward.1} parent=1 // pred_region
      _
    $region45: #{bilstm_ner_forward.1} parent=1 // pred_fallthru
      _
    %1585 = vsyncpa [#allocation5], 1

</llo_original>
